<compile_context>
chip_gen: v7x
topology: tpu7x:2x2x1
jax: 0.10.0
libtpu: 0.0.40
codegen_flags: <defaults>
</compile_context>

<pallas_src>
import math

import numpy as np
import jax
import jax.numpy as jnp
from jax.experimental import pallas as pl
from jax.experimental.pallas import tpu as pltpu


# ---------------------------------------------------------------------------
# Kernel
# ---------------------------------------------------------------------------
def attention_block_kernel(x_ref, w1_ref, s1_ref, b1_ref,
                           w2_ref, s2_ref, b2_ref,
                           sdn_ref, sup_ref,
                           prow_ref, eca_ref, expc_ref, expr_ref,
                           out_ref):
    f32 = jnp.float32
    x = x_ref[...].astype(f32)                      # (M, W*C) lane-dense slab
    sdn = sdn_ref[...]                              # (M, M) shift-down (block-diag per image)
    sup = sup_ref[...]                              # (M, M) shift-up   (block-diag per image)

    def conv3x3(inp, w_ref):
        # One matmul per kernel row (K = W*Cin).  Horizontal zero-padding is baked
        # into the block-Toeplitz weights; the vertical halo is handled by the 0/1
        # shift matrices (which also zero-pad and never leak across images).
        t_top = jnp.dot(inp, w_ref[0], preferred_element_type=f32)
        t_mid = jnp.dot(inp, w_ref[1], preferred_element_type=f32)
        t_bot = jnp.dot(inp, w_ref[2], preferred_element_type=f32)
        return (jnp.dot(sdn, t_top, preferred_element_type=f32)
                + t_mid
                + jnp.dot(sup, t_bot, preferred_element_type=f32))

    # conv1 -> bn1 (folded scale/bias) -> relu
    h1 = conv3x3(x, w1_ref) * s1_ref[...] + b1_ref[...]
    h1 = jnp.maximum(h1, 0.0)

    # conv2 -> bn2 (folded scale/bias)
    h2 = conv3x3(h1, w2_ref) * s2_ref[...] + b2_ref[...]

    # ECA: per-image global average pool + 5-tap channel conv + sigmoid gate.
    # eca_ref = (lane-pool over w) @ (channel Toeplitz); prow averages each image's
    # rows; expc/expr broadcast the (NB, C) gate back to the (M, W*C) layout.
    per_row = jnp.dot(h2, eca_ref[...], preferred_element_type=f32)        # (M, C)
    gate = jax.nn.sigmoid(
        jnp.dot(prow_ref[...], per_row, preferred_element_type=f32))       # (NB, C)
    gate_wide = jnp.dot(gate, expc_ref[...], preferred_element_type=f32)   # (NB, W*C)
    gate_full = jnp.dot(expr_ref[...], gate_wide,
                        preferred_element_type=f32)                        # (M, W*C)

    # gate, identity residual (downsample is None), final relu
    out_ref[...] = jnp.maximum(h2 * gate_full + x, 0.0).astype(out_ref.dtype)


# ---------------------------------------------------------------------------
# Host-side constant-matrix builders
# ---------------------------------------------------------------------------
def _block_toeplitz(w_hwio, W):
    """(3,3,Cin,Cout) conv weights -> 3 row matrices of shape (W*Cin, W*Cout)."""
    _, _, cin, cout = w_hwio.shape
    w = np.asarray(w_hwio, np.float32)
    bm = np.zeros((3, W * cin, W * cout), np.float32)
    for kh in range(3):
        for kw in range(3):
            for wo in range(W):
                wi = wo + kw - 1
                if 0 <= wi < W:
                    bm[kh, wi * cin:(wi + 1) * cin,
                       wo * cout:(wo + 1) * cout] = w[kh, kw]
    return jnp.asarray(bm)


def _eca_toeplitz(eca_w, C):
    """ECA 1-D conv (kernel k, pad (k-1)//2, no bias) as a (C, C) matrix."""
    k = int(eca_w.shape[0])
    pad = (k - 1) // 2
    w = np.asarray(eca_w, np.float32)
    t = np.zeros((C, C), np.float32)
    for c in range(C):
        for i in range(k):
            j = c - pad + i
            if 0 <= j < C:
                t[j, c] = w[i]
    return t


# ---------------------------------------------------------------------------
# Wrapper
# ---------------------------------------------------------------------------
def attention_block_pallas(x_nhwc, w1, w2, bn1_scale, bn1_bias,
                           bn2_scale, bn2_bias, eca_w, nb=None):
    N, H, W, Cin = x_nhwc.shape
    Cout = w1.shape[-1]
    assert Cin == Cout, "identity residual requires inplanes == planes"
    nb = N if nb is None else nb           # images per block (batch folded into M)
    assert N % nb == 0
    M = nb * H
    WC = W * Cout

    # Activations as (N*H, W*C): plain row-major reshape.
    x2d = x_nhwc.reshape(N * H, W * Cin)

    # Conv weights as block-Toeplitz row matrices.
    w1m = _block_toeplitz(w1, W)                               # (3, W*Cin, W*C)
    w2m = _block_toeplitz(w2, W)                               # (3, W*C,   W*C)

    # Folded BN scale / bias tiled over the W*C lane layout.
    s1w = jnp.tile(bn1_scale.astype(jnp.float32), W).reshape(1, WC)
    b1w = jnp.tile(bn1_bias.astype(jnp.float32), W).reshape(1, WC)
    s2w = jnp.tile(bn2_scale.astype(jnp.float32), W).reshape(1, WC)
    b2w = jnp.tile(bn2_bias.astype(jnp.float32), W).reshape(1, WC)

    # Vertical-halo shift matrices (block-diagonal per image inside a block).
    sdn = np.zeros((M, M), np.float32)
    sup = np.zeros((M, M), np.float32)
    for n in range(nb):
        for h in range(H):
            if h >= 1:
                sdn[n * H + h, n * H + h - 1] = 1.0
            if h <= H - 2:
                sup[n * H + h, n * H + h + 1] = 1.0
    sdn = jnp.asarray(sdn)
    sup = jnp.asarray(sup)

    # ECA helper matrices.
    pcols = np.zeros((WC, Cout), np.float32)     # avg over w per channel (lanes)
    expc = np.zeros((Cout, WC), np.float32)      # channel gate -> W*C lanes
    for w in range(W):
        for c in range(Cout):
            pcols[w * Cout + c, c] = 1.0 / W
            expc[c, w * Cout + c] = 1.0
    eca = jnp.asarray(pcols @ _eca_toeplitz(eca_w, Cout))      # (W*C, C)
    expc = jnp.asarray(expc)

    prow = np.zeros((nb, M), np.float32)         # per-image row average
    expr = np.zeros((M, nb), np.float32)         # per-image gate -> rows
    for n in range(nb):
        prow[n, n * H:(n + 1) * H] = 1.0 / H
        expr[n * H:(n + 1) * H, n] = 1.0
    prow = jnp.asarray(prow)
    expr = jnp.asarray(expr)

    const = lambda *idx: (lambda b: idx)
    out2d = pl.pallas_call(
        attention_block_kernel,
        out_shape=jax.ShapeDtypeStruct((N * H, WC), x_nhwc.dtype),
        grid_spec=pltpu.PrefetchScalarGridSpec(
            num_scalar_prefetch=0,
            grid=(N // nb,),
            in_specs=[
                pl.BlockSpec((M, W * Cin), lambda b: (b, 0)),      # x slab
                pl.BlockSpec((3, W * Cin, WC), const(0, 0, 0)),    # conv1 Toeplitz
                pl.BlockSpec((1, WC), const(0, 0)),                # bn1 scale
                pl.BlockSpec((1, WC), const(0, 0)),                # bn1 bias
                pl.BlockSpec((3, WC, WC), const(0, 0, 0)),         # conv2 Toeplitz
                pl.BlockSpec((1, WC), const(0, 0)),                # bn2 scale
                pl.BlockSpec((1, WC), const(0, 0)),                # bn2 bias
                pl.BlockSpec((M, M), const(0, 0)),                 # shift-down
                pl.BlockSpec((M, M), const(0, 0)),                 # shift-up
                pl.BlockSpec((nb, M), const(0, 0)),                # row pool
                pl.BlockSpec((WC, Cout), const(0, 0)),             # eca (pool@Toeplitz)
                pl.BlockSpec((Cout, WC), const(0, 0)),             # gate -> lanes
                pl.BlockSpec((M, nb), const(0, 0)),                # gate -> rows
            ],
            out_specs=pl.BlockSpec((M, WC), lambda b: (b, 0)),
        ),
        compiler_params=pltpu.CompilerParams(
            dimension_semantics=("parallel",)),    # batch chunks -> v7x's 2 TCs
    )(x2d, w1m, s1w, b1w, w2m, s2w, b2w, sdn, sup, prow, eca, expc, expr)

    return out2d.reshape(N, H, W, Cout)


# ---------------------------------------------------------------------------
# Reference (plain JAX) for verification
# ---------------------------------------------------------------------------
def reference_forward(x_nhwc, w1, bn1, w2, bn2, eca_w, eps=1e-5):
    def conv(x, w):
        return jax.lax.conv_general_dilated(
            x, w, (1, 1), ((1, 1), (1, 1)),
            dimension_numbers=("NHWC", "HWIO", "NHWC"))

    def bn(x, p):
        g, b, m, v = p
        return (x - m) / jnp.sqrt(v + eps) * g + b

    out = jax.nn.relu(bn(conv(x_nhwc, w1), bn1))
    out = bn(conv(out, w2), bn2)
    pooled = out.mean(axis=(1, 2))                       # (N, C)
    K = eca_w.shape[0]
    pad = (K - 1) // 2
    pp = jnp.pad(pooled, ((0, 0), (pad, pad)))
    y = jnp.stack([(pp[:, c:c + K] * eca_w).sum(-1)
                   for c in range(pooled.shape[1])], axis=-1)
    y = jax.nn.sigmoid(y)
    out = out * y[:, None, None, :]
    return jax.nn.relu(out + x_nhwc)


if __name__ == "__main__":
    # Shapes consistent with AttentionBlock(inplanes=planes, stride=1)
    N, C, H, W = 2, 4, 16, 16
    eps = 1e-5

    key = jax.random.PRNGKey(0)
    ks = jax.random.split(key, 12)

    x_nchw = jax.random.normal(ks[0], (N, C, H, W), jnp.float32)
    x_nhwc = jnp.transpose(x_nchw, (0, 2, 3, 1))

    # conv weights (HWIO)
    w1 = jax.random.normal(ks[1], (3, 3, C, C), jnp.float32) * 0.2
    w2 = jax.random.normal(ks[2], (3, 3, C, C), jnp.float32) * 0.2

    # BatchNorm params (inference / running-stats semantics)
    g1 = jax.random.uniform(ks[3], (C,), jnp.float32, 0.5, 1.5)
    bta1 = jax.random.normal(ks[4], (C,), jnp.float32) * 0.1
    m1 = jax.random.normal(ks[5], (C,), jnp.float32) * 0.1
    v1 = jax.random.uniform(ks[6], (C,), jnp.float32, 0.5, 1.5)
    g2 = jax.random.uniform(ks[7], (C,), jnp.float32, 0.5, 1.5)
    bta2 = jax.random.normal(ks[8], (C,), jnp.float32) * 0.1
    m2 = jax.random.normal(ks[9], (C,), jnp.float32) * 0.1
    v2 = jax.random.uniform(ks[10], (C,), jnp.float32, 0.5, 1.5)

    # ECA block: kernel size from the default channel=196 constructor arg -> 5
    eca_channel, eca_b, eca_gamma = 196, 1, 2
    ksize = int(abs((math.log(eca_channel, 2) + eca_b) / eca_gamma))
    ksize = ksize if ksize % 2 else ksize + 1
    eca_w = jax.random.normal(ks[11], (ksize,), jnp.float32) * 0.3

    # Fold BN into per-channel scale/bias (inference form)
    s1 = g1 / jnp.sqrt(v1 + eps)
    b1 = bta1 - m1 * s1
    s2 = g2 / jnp.sqrt(v2 + eps)
    b2 = bta2 - m2 * s2

    out = attention_block_pallas(x_nhwc, w1, w2, s1, b1, s2, b2, eca_w)
    out = jax.block_until_ready(out)

    ref = reference_forward(x_nhwc, w1, (g1, bta1, m1, v1),
                            w2, (g2, bta2, m2, v2), eca_w, eps)
    assert out.shape == (N, H, W, C)
    err = jnp.max(jnp.abs(out - ref))
    assert jnp.allclose(out, ref, rtol=1e-4, atol=1e-4), f"max abs err = {err}"

    print("KERNEL_OK")
</pallas_src>

<mosaic_0001>
module attributes {stable_mosaic.version = 11 : i64} {
  func.func @attention_block_kernel(%arg0: i32, %arg1: memref<32x64xf32, #tpu.memory_space<vmem>>, %arg2: memref<3x64x64xf32, #tpu.memory_space<vmem>>, %arg3: memref<1x64xf32, #tpu.memory_space<vmem>>, %arg4: memref<1x64xf32, #tpu.memory_space<vmem>>, %arg5: memref<3x64x64xf32, #tpu.memory_space<vmem>>, %arg6: memref<1x64xf32, #tpu.memory_space<vmem>>, %arg7: memref<1x64xf32, #tpu.memory_space<vmem>>, %arg8: memref<32x32xf32, #tpu.memory_space<vmem>>, %arg9: memref<32x32xf32, #tpu.memory_space<vmem>>, %arg10: memref<2x32xf32, #tpu.memory_space<vmem>>, %arg11: memref<64x4xf32, #tpu.memory_space<vmem>>, %arg12: memref<4x64xf32, #tpu.memory_space<vmem>>, %arg13: memref<32x2xf32, #tpu.memory_space<vmem>>, %arg14: memref<32x64xf32, #tpu.memory_space<vmem>>) attributes {dimension_semantics = [#tpu.dimension_semantics<parallel>], iteration_bounds = array<i64: 1>, scalar_prefetch = 0 : i64, scratch_operands = 0 : i64, tpu.core_type = #tpu.core_type<tc>, window_params = [{transform_indices = @transform_0, window_bounds = array<i64: 32, 64>}, {pipeline_mode = #tpu.pipeline_mode<synchronous>, transform_indices = @transform_1, window_bounds = array<i64: 3, 64, 64>}, {pipeline_mode = #tpu.pipeline_mode<synchronous>, transform_indices = @transform_2, window_bounds = array<i64: 1, 64>}, {pipeline_mode = #tpu.pipeline_mode<synchronous>, transform_indices = @transform_3, window_bounds = array<i64: 1, 64>}, {pipeline_mode = #tpu.pipeline_mode<synchronous>, transform_indices = @transform_4, window_bounds = array<i64: 3, 64, 64>}, {pipeline_mode = #tpu.pipeline_mode<synchronous>, transform_indices = @transform_5, window_bounds = array<i64: 1, 64>}, {pipeline_mode = #tpu.pipeline_mode<synchronous>, transform_indices = @transform_6, window_bounds = array<i64: 1, 64>}, {pipeline_mode = #tpu.pipeline_mode<synchronous>, transform_indices = @transform_7, window_bounds = array<i64: 32, 32>}, {pipeline_mode = #tpu.pipeline_mode<synchronous>, transform_indices = @transform_8, window_bounds = array<i64: 32, 32>}, {pipeline_mode = #tpu.pipeline_mode<synchronous>, transform_indices = @transform_9, window_bounds = array<i64: 2, 32>}, {pipeline_mode = #tpu.pipeline_mode<synchronous>, transform_indices = @transform_10, window_bounds = array<i64: 64, 4>}, {pipeline_mode = #tpu.pipeline_mode<synchronous>, transform_indices = @transform_11, window_bounds = array<i64: 4, 64>}, {pipeline_mode = #tpu.pipeline_mode<synchronous>, transform_indices = @transform_12, window_bounds = array<i64: 32, 2>}, {transform_indices = @transform_13, window_bounds = array<i64: 32, 64>}]} {
    %c0 = arith.constant 0 : index
    %c0_0 = arith.constant 0 : index
    %0 = vector.load %arg1[%c0, %c0_0] : memref<32x64xf32, #tpu.memory_space<vmem>>, vector<32x64xf32>
    %c0_1 = arith.constant 0 : index
    %c0_2 = arith.constant 0 : index
    %1 = vector.load %arg8[%c0_1, %c0_2] : memref<32x32xf32, #tpu.memory_space<vmem>>, vector<32x32xf32>
    %c0_3 = arith.constant 0 : index
    %c0_4 = arith.constant 0 : index
    %2 = vector.load %arg9[%c0_3, %c0_4] : memref<32x32xf32, #tpu.memory_space<vmem>>, vector<32x32xf32>
    %c0_5 = arith.constant 0 : index
    %c0_6 = arith.constant 0 : index
    %c0_7 = arith.constant 0 : index
    %3 = vector.load %arg2[%c0_5, %c0_6, %c0_7] : memref<3x64x64xf32, #tpu.memory_space<vmem>>, vector<1x64x64xf32>
    %4 = vector.shape_cast %3 : vector<1x64x64xf32> to vector<64x64xf32>
    %cst = arith.constant dense<0.000000e+00> : vector<32x64xf32>
    %5 = tpu.matmul %0, %4, %cst {dimension_numbers = #tpu.dot_dimension_numbers<[1], [0], [0], [1], [0, 0, 1, 1], [], []>} : vector<32x64xf32>, vector<64x64xf32>, vector<32x64xf32> -> vector<32x64xf32>
    %c1 = arith.constant 1 : index
    %c0_8 = arith.constant 0 : index
    %c0_9 = arith.constant 0 : index
    %6 = vector.load %arg2[%c1, %c0_8, %c0_9] : memref<3x64x64xf32, #tpu.memory_space<vmem>>, vector<1x64x64xf32>
    %7 = vector.shape_cast %6 : vector<1x64x64xf32> to vector<64x64xf32>
    %cst_10 = arith.constant dense<0.000000e+00> : vector<32x64xf32>
    %8 = tpu.matmul %0, %7, %cst_10 {dimension_numbers = #tpu.dot_dimension_numbers<[1], [0], [0], [1], [0, 0, 1, 1], [], []>} : vector<32x64xf32>, vector<64x64xf32>, vector<32x64xf32> -> vector<32x64xf32>
    %c2 = arith.constant 2 : index
    %c0_11 = arith.constant 0 : index
    %c0_12 = arith.constant 0 : index
    %9 = vector.load %arg2[%c2, %c0_11, %c0_12] : memref<3x64x64xf32, #tpu.memory_space<vmem>>, vector<1x64x64xf32>
    %10 = vector.shape_cast %9 : vector<1x64x64xf32> to vector<64x64xf32>
    %cst_13 = arith.constant dense<0.000000e+00> : vector<32x64xf32>
    %11 = tpu.matmul %0, %10, %cst_13 {dimension_numbers = #tpu.dot_dimension_numbers<[1], [0], [0], [1], [0, 0, 1, 1], [], []>} : vector<32x64xf32>, vector<64x64xf32>, vector<32x64xf32> -> vector<32x64xf32>
    %cst_14 = arith.constant dense<0.000000e+00> : vector<32x64xf32>
    %12 = tpu.matmul %1, %5, %cst_14 {dimension_numbers = #tpu.dot_dimension_numbers<[1], [0], [0], [1], [0, 0, 1, 1], [], []>} : vector<32x32xf32>, vector<32x64xf32>, vector<32x64xf32> -> vector<32x64xf32>
    %13 = arith.addf %12, %8 : vector<32x64xf32>
    %cst_15 = arith.constant dense<0.000000e+00> : vector<32x64xf32>
    %14 = tpu.matmul %2, %11, %cst_15 {dimension_numbers = #tpu.dot_dimension_numbers<[1], [0], [0], [1], [0, 0, 1, 1], [], []>} : vector<32x32xf32>, vector<32x64xf32>, vector<32x64xf32> -> vector<32x64xf32>
    %15 = arith.addf %13, %14 : vector<32x64xf32>
    %c0_16 = arith.constant 0 : index
    %c0_17 = arith.constant 0 : index
    %16 = vector.load %arg3[%c0_16, %c0_17] : memref<1x64xf32, #tpu.memory_space<vmem>>, vector<1x64xf32>
    %17 = vector.broadcast %16 : vector<1x64xf32> to vector<32x64xf32>
    %18 = arith.mulf %15, %17 : vector<32x64xf32>
    %c0_18 = arith.constant 0 : index
    %c0_19 = arith.constant 0 : index
    %19 = vector.load %arg4[%c0_18, %c0_19] : memref<1x64xf32, #tpu.memory_space<vmem>>, vector<1x64xf32>
    %20 = vector.broadcast %19 : vector<1x64xf32> to vector<32x64xf32>
    %21 = arith.addf %18, %20 : vector<32x64xf32>
    %cst_20 = arith.constant 0.000000e+00 : f32
    %22 = vector.broadcast %cst_20 : f32 to vector<32x64xf32>
    %23 = arith.maximumf %21, %22 : vector<32x64xf32>
    %c0_21 = arith.constant 0 : index
    %c0_22 = arith.constant 0 : index
    %c0_23 = arith.constant 0 : index
    %24 = vector.load %arg5[%c0_21, %c0_22, %c0_23] : memref<3x64x64xf32, #tpu.memory_space<vmem>>, vector<1x64x64xf32>
    %25 = vector.shape_cast %24 : vector<1x64x64xf32> to vector<64x64xf32>
    %cst_24 = arith.constant dense<0.000000e+00> : vector<32x64xf32>
    %26 = tpu.matmul %23, %25, %cst_24 {dimension_numbers = #tpu.dot_dimension_numbers<[1], [0], [0], [1], [0, 0, 1, 1], [], []>} : vector<32x64xf32>, vector<64x64xf32>, vector<32x64xf32> -> vector<32x64xf32>
    %c1_25 = arith.constant 1 : index
    %c0_26 = arith.constant 0 : index
    %c0_27 = arith.constant 0 : index
    %27 = vector.load %arg5[%c1_25, %c0_26, %c0_27] : memref<3x64x64xf32, #tpu.memory_space<vmem>>, vector<1x64x64xf32>
    %28 = vector.shape_cast %27 : vector<1x64x64xf32> to vector<64x64xf32>
    %cst_28 = arith.constant dense<0.000000e+00> : vector<32x64xf32>
    %29 = tpu.matmul %23, %28, %cst_28 {dimension_numbers = #tpu.dot_dimension_numbers<[1], [0], [0], [1], [0, 0, 1, 1], [], []>} : vector<32x64xf32>, vector<64x64xf32>, vector<32x64xf32> -> vector<32x64xf32>
    %c2_29 = arith.constant 2 : index
    %c0_30 = arith.constant 0 : index
    %c0_31 = arith.constant 0 : index
    %30 = vector.load %arg5[%c2_29, %c0_30, %c0_31] : memref<3x64x64xf32, #tpu.memory_space<vmem>>, vector<1x64x64xf32>
    %31 = vector.shape_cast %30 : vector<1x64x64xf32> to vector<64x64xf32>
    %cst_32 = arith.constant dense<0.000000e+00> : vector<32x64xf32>
    %32 = tpu.matmul %23, %31, %cst_32 {dimension_numbers = #tpu.dot_dimension_numbers<[1], [0], [0], [1], [0, 0, 1, 1], [], []>} : vector<32x64xf32>, vector<64x64xf32>, vector<32x64xf32> -> vector<32x64xf32>
    %cst_33 = arith.constant dense<0.000000e+00> : vector<32x64xf32>
    %33 = tpu.matmul %1, %26, %cst_33 {dimension_numbers = #tpu.dot_dimension_numbers<[1], [0], [0], [1], [0, 0, 1, 1], [], []>} : vector<32x32xf32>, vector<32x64xf32>, vector<32x64xf32> -> vector<32x64xf32>
    %34 = arith.addf %33, %29 : vector<32x64xf32>
    %cst_34 = arith.constant dense<0.000000e+00> : vector<32x64xf32>
    %35 = tpu.matmul %2, %32, %cst_34 {dimension_numbers = #tpu.dot_dimension_numbers<[1], [0], [0], [1], [0, 0, 1, 1], [], []>} : vector<32x32xf32>, vector<32x64xf32>, vector<32x64xf32> -> vector<32x64xf32>
    %36 = arith.addf %34, %35 : vector<32x64xf32>
    %c0_35 = arith.constant 0 : index
    %c0_36 = arith.constant 0 : index
    %37 = vector.load %arg6[%c0_35, %c0_36] : memref<1x64xf32, #tpu.memory_space<vmem>>, vector<1x64xf32>
    %38 = vector.broadcast %37 : vector<1x64xf32> to vector<32x64xf32>
    %39 = arith.mulf %36, %38 : vector<32x64xf32>
    %c0_37 = arith.constant 0 : index
    %c0_38 = arith.constant 0 : index
    %40 = vector.load %arg7[%c0_37, %c0_38] : memref<1x64xf32, #tpu.memory_space<vmem>>, vector<1x64xf32>
    %41 = vector.broadcast %40 : vector<1x64xf32> to vector<32x64xf32>
    %42 = arith.addf %39, %41 : vector<32x64xf32>
    %c0_39 = arith.constant 0 : index
    %c0_40 = arith.constant 0 : index
    %43 = vector.load %arg11[%c0_39, %c0_40] : memref<64x4xf32, #tpu.memory_space<vmem>>, vector<64x4xf32>
    %cst_41 = arith.constant dense<0.000000e+00> : vector<32x4xf32>
    %44 = tpu.matmul %42, %43, %cst_41 {dimension_numbers = #tpu.dot_dimension_numbers<[1], [0], [0], [1], [0, 0, 1, 1], [], []>} : vector<32x64xf32>, vector<64x4xf32>, vector<32x4xf32> -> vector<32x4xf32>
    %c0_42 = arith.constant 0 : index
    %c0_43 = arith.constant 0 : index
    %45 = vector.load %arg10[%c0_42, %c0_43] : memref<2x32xf32, #tpu.memory_space<vmem>>, vector<2x32xf32>
    %cst_44 = arith.constant dense<0.000000e+00> : vector<2x4xf32>
    %46 = tpu.matmul %45, %44, %cst_44 {dimension_numbers = #tpu.dot_dimension_numbers<[1], [0], [0], [1], [0, 0, 1, 1], [], []>} : vector<2x32xf32>, vector<32x4xf32>, vector<2x4xf32> -> vector<2x4xf32>
    %47 = arith.negf %46 : vector<2x4xf32>
    %48 = math.exp %47 : vector<2x4xf32>
    %cst_45 = arith.constant 1.000000e+00 : f32
    %49 = vector.broadcast %cst_45 : f32 to vector<2x4xf32>
    %50 = arith.addf %49, %48 : vector<2x4xf32>
    %51 = arith.divf %49, %50 : vector<2x4xf32>
    %c0_46 = arith.constant 0 : index
    %c0_47 = arith.constant 0 : index
    %52 = vector.load %arg12[%c0_46, %c0_47] : memref<4x64xf32, #tpu.memory_space<vmem>>, vector<4x64xf32>
    %cst_48 = arith.constant dense<0.000000e+00> : vector<2x64xf32>
    %53 = tpu.matmul %51, %52, %cst_48 {dimension_numbers = #tpu.dot_dimension_numbers<[1], [0], [0], [1], [0, 0, 1, 1], [], []>} : vector<2x4xf32>, vector<4x64xf32>, vector<2x64xf32> -> vector<2x64xf32>
    %c0_49 = arith.constant 0 : index
    %c0_50 = arith.constant 0 : index
    %54 = vector.load %arg13[%c0_49, %c0_50] : memref<32x2xf32, #tpu.memory_space<vmem>>, vector<32x2xf32>
    %cst_51 = arith.constant dense<0.000000e+00> : vector<32x64xf32>
    %55 = tpu.matmul %54, %53, %cst_51 {dimension_numbers = #tpu.dot_dimension_numbers<[1], [0], [0], [1], [0, 0, 1, 1], [], []>} : vector<32x2xf32>, vector<2x64xf32>, vector<32x64xf32> -> vector<32x64xf32>
    %56 = arith.mulf %42, %55 : vector<32x64xf32>
    %57 = arith.addf %56, %0 : vector<32x64xf32>
    %cst_52 = arith.constant 0.000000e+00 : f32
    %58 = vector.broadcast %cst_52 : f32 to vector<32x64xf32>
    %59 = arith.maximumf %57, %58 : vector<32x64xf32>
    %c0_53 = arith.constant 0 : index
    %c0_54 = arith.constant 0 : index
    %60 = vector.load %arg14[%c0_53, %c0_54] : memref<32x64xf32, #tpu.memory_space<vmem>>, vector<32x64xf32>
    tpu.vector_store %arg14[%c0_53, %c0_54], %59 {strides = array<i32>} : memref<32x64xf32, #tpu.memory_space<vmem>>, vector<32x64xf32>,
    return
  }
  func.func @transform_0(%arg0: i32) -> (i32, i32) {
    %c0_i32 = arith.constant 0 : i32
    %c0_i32_0 = arith.constant 0 : i32
    return %arg0, %c0_i32 : i32, i32
  }
  func.func @transform_1(%arg0: i32) -> (i32, i32, i32) {
    %c0_i32 = arith.constant 0 : i32
    %c0_i32_0 = arith.constant 0 : i32
    %c0_i32_1 = arith.constant 0 : i32
    %c0_i32_2 = arith.constant 0 : i32
    return %c0_i32, %c0_i32_0, %c0_i32_1 : i32, i32, i32
  }
  func.func @transform_2(%arg0: i32) -> (i32, i32) {
    %c0_i32 = arith.constant 0 : i32
    %c0_i32_0 = arith.constant 0 : i32
    %c0_i32_1 = arith.constant 0 : i32
    return %c0_i32, %c0_i32_0 : i32, i32
  }
  func.func @transform_3(%arg0: i32) -> (i32, i32) {
    %c0_i32 = arith.constant 0 : i32
    %c0_i32_0 = arith.constant 0 : i32
    %c0_i32_1 = arith.constant 0 : i32
    return %c0_i32, %c0_i32_0 : i32, i32
  }
  func.func @transform_4(%arg0: i32) -> (i32, i32, i32) {
    %c0_i32 = arith.constant 0 : i32
    %c0_i32_0 = arith.constant 0 : i32
    %c0_i32_1 = arith.constant 0 : i32
    %c0_i32_2 = arith.constant 0 : i32
    return %c0_i32, %c0_i32_0, %c0_i32_1 : i32, i32, i32
  }
  func.func @transform_5(%arg0: i32) -> (i32, i32) {
    %c0_i32 = arith.constant 0 : i32
    %c0_i32_0 = arith.constant 0 : i32
    %c0_i32_1 = arith.constant 0 : i32
    return %c0_i32, %c0_i32_0 : i32, i32
  }
  func.func @transform_6(%arg0: i32) -> (i32, i32) {
    %c0_i32 = arith.constant 0 : i32
    %c0_i32_0 = arith.constant 0 : i32
    %c0_i32_1 = arith.constant 0 : i32
    return %c0_i32, %c0_i32_0 : i32, i32
  }
  func.func @transform_7(%arg0: i32) -> (i32, i32) {
    %c0_i32 = arith.constant 0 : i32
    %c0_i32_0 = arith.constant 0 : i32
    %c0_i32_1 = arith.constant 0 : i32
    return %c0_i32, %c0_i32_0 : i32, i32
  }
  func.func @transform_8(%arg0: i32) -> (i32, i32) {
    %c0_i32 = arith.constant 0 : i32
    %c0_i32_0 = arith.constant 0 : i32
    %c0_i32_1 = arith.constant 0 : i32
    return %c0_i32, %c0_i32_0 : i32, i32
  }
  func.func @transform_9(%arg0: i32) -> (i32, i32) {
    %c0_i32 = arith.constant 0 : i32
    %c0_i32_0 = arith.constant 0 : i32
    %c0_i32_1 = arith.constant 0 : i32
    return %c0_i32, %c0_i32_0 : i32, i32
  }
  func.func @transform_10(%arg0: i32) -> (i32, i32) {
    %c0_i32 = arith.constant 0 : i32
    %c0_i32_0 = arith.constant 0 : i32
    %c0_i32_1 = arith.constant 0 : i32
    return %c0_i32, %c0_i32_0 : i32, i32
  }
  func.func @transform_11(%arg0: i32) -> (i32, i32) {
    %c0_i32 = arith.constant 0 : i32
    %c0_i32_0 = arith.constant 0 : i32
    %c0_i32_1 = arith.constant 0 : i32
    return %c0_i32, %c0_i32_0 : i32, i32
  }
  func.func @transform_12(%arg0: i32) -> (i32, i32) {
    %c0_i32 = arith.constant 0 : i32
    %c0_i32_0 = arith.constant 0 : i32
    %c0_i32_1 = arith.constant 0 : i32
    return %c0_i32, %c0_i32_0 : i32, i32
  }
  func.func @transform_13(%arg0: i32) -> (i32, i32) {
    %c0_i32 = arith.constant 0 : i32
    %c0_i32_0 = arith.constant 0 : i32
    return %arg0, %c0_i32 : i32, i32
  }
}

</mosaic_0001>

<llo_original>
// kernel: tpu_custom_call.1
$region0: #{tpu_custom_call.1}
  #allocation0 [shape = 'u32[]', space=smem, size = 0x4, offset = 0x4, fixed_abs, tag = 'smem constant byte address 0x4 - core index']
  #allocation1 [shape = 'u32[144,128]{1,0:T(1,128)}', space=vmem, size = 0x12000, scoped, tag = 'internal scratch']
  %s0 = inlined_call_operand.vmem [shape: f32[32,64], index: 0, kind: input, shape index: {}]
  %s1 = inlined_call_operand.hbm [shape: f32[3,64,64], index: 1, kind: input, shape index: {}]
  %s2 = inlined_call_operand.vmem [shape: f32[1,64], index: 2, kind: input, shape index: {}]
  %s3 = inlined_call_operand.vmem [shape: f32[1,64], index: 3, kind: input, shape index: {}]
  %s4 = inlined_call_operand.hbm [shape: f32[3,64,64], index: 4, kind: input, shape index: {}]
  %s5 = inlined_call_operand.vmem [shape: f32[1,64], index: 5, kind: input, shape index: {}]
  %s6 = inlined_call_operand.vmem [shape: f32[1,64], index: 6, kind: input, shape index: {}]
  %s7 = inlined_call_operand.vmem [shape: f32[32,32], index: 7, kind: input, shape index: {}]
  %s8 = inlined_call_operand.vmem [shape: f32[32,32], index: 8, kind: input, shape index: {}]
  %s9 = inlined_call_operand.vmem [shape: f32[2,32], index: 9, kind: input, shape index: {}]
  %s10 = inlined_call_operand.vmem [shape: f32[64,4], index: 10, kind: input, shape index: {}]
  %s11 = inlined_call_operand.vmem [shape: f32[4,64], index: 11, kind: input, shape index: {}]
  %s12 = inlined_call_operand.vmem [shape: f32[32,2], index: 12, kind: input, shape index: {}]
  %s13 = inlined_call_operand.hbm [shape: f32[32,64], index: 13, kind: output, shape index: {}]
  %s14 = sld [smem:[#allocation0]]
  $region70: #{tpu_custom_call.1} parent=0
    _
  %s16 = ssub.s32 1, %s14
  %s17 = scalar_select 0, %s16, %s14
  $region1: #{tpu_custom_call.1} parent=0
    #allocation2 [shape = 'u8[98304]{0}', space=vmem, size = 0x18000, scoped, tag = 'input window, operand 1, single buffered']
    #allocation3 [shape = 's32[1]{0}', space=sflag, size = 0x4, scoped, tag = 'scoped memory for tpu_custom_call.1']
    #allocation4 [shape = 's32[1]{0}', space=sflag, size = 0x4, scoped, tag = 'scoped memory for tpu_custom_call.1']
    #allocation5 [shape = 'u8[98304]{0}', space=vmem, size = 0x18000, scoped, tag = 'input window, operand 4, single buffered']
    #allocation6 [shape = 's32[1]{0}', space=sflag, size = 0x4, scoped, tag = 'scoped memory for tpu_custom_call.1']
    #allocation7 [shape = 'u8[16384]{0}', space=vmem, size = 0x4000, scoped, tag = 'output window, operand 0, single buffered']
    %18 = vsyncpa [#allocation3], 0
    %19 = vsyncpa [#allocation6], 0
    %20 = vsyncpa [#allocation4], 0
    // Predicated region
    $region2: #{tpu_custom_call.1} parent=1 // pred_check
      _
    $region3: #{tpu_custom_call.1} parent=1 // pred_check_branch
      %22 = sbr.rel (0) target = $region5
    $region4: #{tpu_custom_call.1} parent=1 // pred_region
      _
    $region5: #{tpu_custom_call.1} parent=1 // pred_fallthru
      _
    // Predicated region
    $region6: #{tpu_custom_call.1} parent=1 // pred_check
      _
    $region7: #{tpu_custom_call.1} parent=1 // pred_check_branch
      %24 = sbr.rel (0) target = $region9
    $region8: #{tpu_custom_call.1} parent=1 // pred_region
      %s26 = ssub.s32 3072, 3072
      %27 = vsyncadd [#allocation3], %s26
      %s28 = sshll.u32 [#allocation2], 4
      %s29 = int_to_ptr.vmem [resolvable:$true] %s28
      %34 = dma.hbm_to_vmem [thread:$0]  %s1, 3072, %s29, [#allocation3], 128, 128, 8
    $region9: #{tpu_custom_call.1} parent=1 // pred_fallthru
      _
    // Predicated region
    $region10: #{tpu_custom_call.1} parent=1 // pred_check
      _
    $region11: #{tpu_custom_call.1} parent=1 // pred_check_branch
      %36 = sbr.rel (0) target = $region13
    $region12: #{tpu_custom_call.1} parent=1 // pred_region
      _
    $region13: #{tpu_custom_call.1} parent=1 // pred_fallthru
      _
    // Predicated region
    $region14: #{tpu_custom_call.1} parent=1 // pred_check
      _
    $region15: #{tpu_custom_call.1} parent=1 // pred_check_branch
      %38 = sbr.rel (0) target = $region17
    $region16: #{tpu_custom_call.1} parent=1 // pred_region
      _
    $region17: #{tpu_custom_call.1} parent=1 // pred_fallthru
      _
    // Predicated region
    $region18: #{tpu_custom_call.1} parent=1 // pred_check
      _
    $region19: #{tpu_custom_call.1} parent=1 // pred_check_branch
      %40 = sbr.rel (0) target = $region21
    $region20: #{tpu_custom_call.1} parent=1 // pred_region
      %s42 = ssub.s32 3072, 3072
      %43 = vsyncadd [#allocation6], %s42
      %s44 = sshll.u32 [#allocation5], 4
      %s45 = int_to_ptr.vmem [resolvable:$true] %s44
      %50 = dma.hbm_to_vmem [thread:$0]  %s4, 3072, %s45, [#allocation6], 128, 128, 8
    $region21: #{tpu_custom_call.1} parent=1 // pred_fallthru
      _
    // Predicated region
    $region22: #{tpu_custom_call.1} parent=1 // pred_check
      _
    $region23: #{tpu_custom_call.1} parent=1 // pred_check_branch
      %52 = sbr.rel (0) target = $region25
    $region24: #{tpu_custom_call.1} parent=1 // pred_region
      _
    $region25: #{tpu_custom_call.1} parent=1 // pred_fallthru
      _
    // Predicated region
    $region26: #{tpu_custom_call.1} parent=1 // pred_check
      _
    $region27: #{tpu_custom_call.1} parent=1 // pred_check_branch
      %54 = sbr.rel (0) target = $region29
    $region28: #{tpu_custom_call.1} parent=1 // pred_region
      _
    $region29: #{tpu_custom_call.1} parent=1 // pred_fallthru
      _
    // Predicated region
    $region30: #{tpu_custom_call.1} parent=1 // pred_check
      _
    $region31: #{tpu_custom_call.1} parent=1 // pred_check_branch
      %56 = sbr.rel (0) target = $region33
    $region32: #{tpu_custom_call.1} parent=1 // pred_region
      _
    $region33: #{tpu_custom_call.1} parent=1 // pred_fallthru
      _
    // Predicated region
    $region34: #{tpu_custom_call.1} parent=1 // pred_check
      _
    $region35: #{tpu_custom_call.1} parent=1 // pred_check_branch
      %58 = sbr.rel (0) target = $region37
    $region36: #{tpu_custom_call.1} parent=1 // pred_region
      _
    $region37: #{tpu_custom_call.1} parent=1 // pred_fallthru
      _
    // Predicated region
    $region38: #{tpu_custom_call.1} parent=1 // pred_check
      _
    $region39: #{tpu_custom_call.1} parent=1 // pred_check_branch
      %60 = sbr.rel (0) target = $region41
    $region40: #{tpu_custom_call.1} parent=1 // pred_region
      _
    $region41: #{tpu_custom_call.1} parent=1 // pred_fallthru
      _
    // Predicated region
    $region42: #{tpu_custom_call.1} parent=1 // pred_check
      _
    $region43: #{tpu_custom_call.1} parent=1 // pred_check_branch
      %62 = sbr.rel (0) target = $region45
    $region44: #{tpu_custom_call.1} parent=1 // pred_region
      _
    $region45: #{tpu_custom_call.1} parent=1 // pred_fallthru
      _
    // Predicated region
    $region46: #{tpu_custom_call.1} parent=1 // pred_check
      _
    $region47: #{tpu_custom_call.1} parent=1 // pred_check_branch
      %64 = sbr.rel (0) target = $region49
    $region48: #{tpu_custom_call.1} parent=1 // pred_region
      _
    $region49: #{tpu_custom_call.1} parent=1 // pred_fallthru
      _
    // Predicated region
    $region50: #{tpu_custom_call.1} parent=1 // pred_check
      _
    $region51: #{tpu_custom_call.1} parent=1 // pred_check_branch
      %66 = sbr.rel (0) target = $region53
    $region52: #{tpu_custom_call.1} parent=1 // pred_region
      _
    $region53: #{tpu_custom_call.1} parent=1 // pred_fallthru
      _
    // Predicated region
    $region54: #{tpu_custom_call.1} parent=1 // pred_check
      _
    $region55: #{tpu_custom_call.1} parent=1 // pred_check_branch
      %68 = sbr.rel (0) target = $region57
    $region56: #{tpu_custom_call.1} parent=1 // pred_region
      %69 = dma.done [#allocation3], 3072
    $region57: #{tpu_custom_call.1} parent=1 // pred_fallthru
      _
    // Predicated region
    $region58: #{tpu_custom_call.1} parent=1 // pred_check
      _
    $region59: #{tpu_custom_call.1} parent=1 // pred_check_branch
      %71 = sbr.rel (0) target = $region61
    $region60: #{tpu_custom_call.1} parent=1 // pred_region
      %72 = dma.done [#allocation6], 3072
    $region61: #{tpu_custom_call.1} parent=1 // pred_fallthru
      _
    %v73 = vld [vmem:[%s0] sm:$0xff]
    %v74 = vld [vmem:[%s0 + $0x8] sm:$0xff]
    %v75 = vld [vmem:[%s0 + $0x10] sm:$0xff]
    %v76 = vld [vmem:[%s0 + $0x18] sm:$0xff]
    %v77 = vld [vmem:[%s7] sm:$0xff]
    %v78 = vld [vmem:[%s7 + $0x8] sm:$0xff]
    %v79 = vld [vmem:[%s7 + $0x10] sm:$0xff]
    %v80 = vld [vmem:[%s7 + $0x18] sm:$0xff]
    %v81 = vld [vmem:[%s8] sm:$0xff]
    %v82 = vld [vmem:[%s8 + $0x8] sm:$0xff]
    %v83 = vld [vmem:[%s8 + $0x10] sm:$0xff]
    %v84 = vld [vmem:[%s8 + $0x18] sm:$0xff]
    %v85 = vld [vmem:[#allocation2] sm:$0xff]
    %v86 = vld [vmem:[#allocation2 + $0x8] sm:$0xff]
    %v87 = vld [vmem:[#allocation2 + $0x10] sm:$0xff]
    %v88 = vld [vmem:[#allocation2 + $0x18] sm:$0xff]
    %v89 = vld [vmem:[#allocation2 + $0x20] sm:$0xff]
    %v90 = vld [vmem:[#allocation2 + $0x28] sm:$0xff]
    %v91 = vld [vmem:[#allocation2 + $0x30] sm:$0xff]
    %v92 = vld [vmem:[#allocation2 + $0x38] sm:$0xff]
    %vm93 = vcmask 523264
    %v95 = vsel %vm93, %v73, 0
    %v98 = vsel %vm93, %v74, 0
    %v101 = vsel %vm93, %v75, 0
    %v104 = vsel %vm93, %v76, 0
    %106 = vmatprep.subr.mxu0 0.0
    %107 = vmatpush1.msra.mxu0 %v85
    %108 = vmatprep.subr.mxu0 0.0
    %109 = vmatpush1.msra.mxu0 %v86
    %110 = vmatprep.subr.mxu0 0.0
    %111 = vmatpush1.msra.mxu0 %v87
    %112 = vmatprep.subr.mxu0 0.0
    %113 = vmatpush1.msra.mxu0 %v88
    %114 = vmatprep.subr.mxu0 0.0
    %115 = vmatpush1.msra.mxu0 %v89
    %116 = vmatprep.subr.mxu0 0.0
    %117 = vmatpush1.msra.mxu0 %v90
    %118 = vmatprep.subr.mxu0 0.0
    %119 = vmatpush1.msra.mxu0 %v91
    %120 = vmatprep.subr.mxu0 0.0
    %121 = vmatpush1.msra.mxu0 %v92
    %122 = vmatprep.subr.mxu0 0.0
    %123 = vmatpush1.msra.mxu0 0.0
    %124 = vmatprep.subr.mxu0 0.0
    %125 = vmatpush1.msra.mxu0 0.0
    %126 = vmatprep.subr.mxu0 0.0
    %127 = vmatpush1.msra.mxu0 0.0
    %128 = vmatprep.subr.mxu0 0.0
    %129 = vmatpush1.msra.mxu0 0.0
    %130 = vmatprep.subr.mxu0 0.0
    %131 = vmatpush1.msra.mxu0 0.0
    %132 = vmatprep.subr.mxu0 0.0
    %133 = vmatpush1.msra.mxu0 0.0
    %134 = vmatprep.subr.mxu0 0.0
    %135 = vmatpush1.msra.mxu0 0.0
    %136 = vmatprep.subr.mxu0 0.0
    %137 = vmatpush1.msra.mxu0 0.0
    %138 = vmatprep.subr.mxu0 0.0
    %139 = vmatpush1.msra.mxu0 0.0
    %140 = vmatprep.subr.mxu0 0.0
    %141 = vmatpush1.msra.mxu0 0.0
    %142 = vmatprep.subr.mxu0 0.0
    %143 = vmatpush1.msra.mxu0 0.0
    %144 = vmatprep.subr.mxu0 0.0
    %145 = vmatpush1.msra.mxu0 0.0
    %146 = vmatprep.subr.mxu0 0.0
    %147 = vmatpush1.msra.mxu0 0.0
    %148 = vmatprep.subr.mxu0 0.0
    %149 = vmatpush1.msra.mxu0 0.0
    %150 = vmatprep.subr.mxu0 0.0
    %151 = vmatpush1.msra.mxu0 0.0
    %152 = vmatprep.subr.mxu0 0.0
    %153 = vmatpush1.msra.mxu0 0.0
    %154 = vmatprep.subr.mxu0 0.0
    %155 = vmatpush1.msra.mxu0 0.0
    %156 = vmatprep.subr.mxu0 0.0
    %157 = vmatpush1.msra.mxu0 0.0
    %158 = vmatprep.subr.mxu0 0.0
    %159 = vmatpush1.msra.mxu0 0.0
    %160 = vmatprep.subr.mxu0 0.0
    %161 = vmatpush1.msra.mxu0 0.0
    %162 = vmatprep.subr.mxu0 0.0
    %163 = vmatpush1.msra.mxu0 0.0
    %164 = vmatprep.subr.mxu0 0.0
    %165 = vmatpush1.msra.mxu0 0.0
    %166 = vmatprep.subr.mxu0 0.0
    %167 = vmatpush1.msra.mxu0 0.0
    %168 = vmatprep.subr.mxu0 0.0
    %169 = vmatpush1.msra.mxu0 0.0
    %170 = vmatprep.mubr.f32.mxu0 0.0
    %171 = vmatmul.mubr.f32.gmra.mrb[0].mxu0 %v95
    %v172 = vpop.f32.mrb[0].mxu0
    %v173 = vadd.f32 0.0, %v172
    %v174 = vpop.f32.mrb[0].mxu0
    %175 = vmatprep.mubr.f32.mxu0 0.0
    %176 = vmatmul.mubr.f32.gmra.mrb[0].mxu0 %v98
    %v177 = vpop.f32.mrb[0].mxu0
    %v178 = vadd.f32 0.0, %v177
    %v179 = vpop.f32.mrb[0].mxu0
    %180 = vmatprep.mubr.f32.mxu0 0.0
    %181 = vmatmul.mubr.f32.gmra.mrb[0].mxu0 %v101
    %v182 = vpop.f32.mrb[0].mxu0
    %v183 = vadd.f32 0.0, %v182
    %v184 = vpop.f32.mrb[0].mxu0
    %185 = vmatprep.mubr.f32.mxu0 0.0
    %186 = vmatmul.mubr.f32.gmra.mrb[0].mxu0 %v104
    %v187 = vpop.f32.mrb[0].mxu0
    %v188 = vadd.f32 0.0, %v187
    %v189 = vpop.f32.mrb[0].mxu0
    %190 = vdwg.mxu0
    %s191 = scalar_lea.vmem [#allocation2], 64
    %v192 = vld [vmem:[%s191] sm:$0xff]
    %v193 = vld [vmem:[%s191 + $0x8] sm:$0xff]
    %v194 = vld [vmem:[%s191 + $0x10] sm:$0xff]
    %v195 = vld [vmem:[%s191 + $0x18] sm:$0xff]
    %v196 = vld [vmem:[%s191 + $0x20] sm:$0xff]
    %v197 = vld [vmem:[%s191 + $0x28] sm:$0xff]
    %v198 = vld [vmem:[%s191 + $0x30] sm:$0xff]
    %v199 = vld [vmem:[%s191 + $0x38] sm:$0xff]
    %200 = vmatprep.subr.mxu0 0.0
    %201 = vmatpush1.msra.mxu0 %v192
    %202 = vmatprep.subr.mxu0 0.0
    %203 = vmatpush1.msra.mxu0 %v193
    %204 = vmatprep.subr.mxu0 0.0
    %205 = vmatpush1.msra.mxu0 %v194
    %206 = vmatprep.subr.mxu0 0.0
    %207 = vmatpush1.msra.mxu0 %v195
    %208 = vmatprep.subr.mxu0 0.0
    %209 = vmatpush1.msra.mxu0 %v196
    %210 = vmatprep.subr.mxu0 0.0
    %211 = vmatpush1.msra.mxu0 %v197
    %212 = vmatprep.subr.mxu0 0.0
    %213 = vmatpush1.msra.mxu0 %v198
    %214 = vmatprep.subr.mxu0 0.0
    %215 = vmatpush1.msra.mxu0 %v199
    %216 = vmatprep.subr.mxu0 0.0
    %217 = vmatpush1.msra.mxu0 0.0
    %218 = vmatprep.subr.mxu0 0.0
    %219 = vmatpush1.msra.mxu0 0.0
    %220 = vmatprep.subr.mxu0 0.0
    %221 = vmatpush1.msra.mxu0 0.0
    %222 = vmatprep.subr.mxu0 0.0
    %223 = vmatpush1.msra.mxu0 0.0
    %224 = vmatprep.subr.mxu0 0.0
    %225 = vmatpush1.msra.mxu0 0.0
    %226 = vmatprep.subr.mxu0 0.0
    %227 = vmatpush1.msra.mxu0 0.0
    %228 = vmatprep.subr.mxu0 0.0
    %229 = vmatpush1.msra.mxu0 0.0
    %230 = vmatprep.subr.mxu0 0.0
    %231 = vmatpush1.msra.mxu0 0.0
    %232 = vmatprep.subr.mxu0 0.0
    %233 = vmatpush1.msra.mxu0 0.0
    %234 = vmatprep.subr.mxu0 0.0
    %235 = vmatpush1.msra.mxu0 0.0
    %236 = vmatprep.subr.mxu0 0.0
    %237 = vmatpush1.msra.mxu0 0.0
    %238 = vmatprep.subr.mxu0 0.0
    %239 = vmatpush1.msra.mxu0 0.0
    %240 = vmatprep.subr.mxu0 0.0
    %241 = vmatpush1.msra.mxu0 0.0
    %242 = vmatprep.subr.mxu0 0.0
    %243 = vmatpush1.msra.mxu0 0.0
    %244 = vmatprep.subr.mxu0 0.0
    %245 = vmatpush1.msra.mxu0 0.0
    %246 = vmatprep.subr.mxu0 0.0
    %247 = vmatpush1.msra.mxu0 0.0
    %248 = vmatprep.subr.mxu0 0.0
    %249 = vmatpush1.msra.mxu0 0.0
    %250 = vmatprep.subr.mxu0 0.0
    %251 = vmatpush1.msra.mxu0 0.0
    %252 = vmatprep.subr.mxu0 0.0
    %253 = vmatpush1.msra.mxu0 0.0
    %254 = vmatprep.subr.mxu0 0.0
    %255 = vmatpush1.msra.mxu0 0.0
    %256 = vmatprep.subr.mxu0 0.0
    %257 = vmatpush1.msra.mxu0 0.0
    %258 = vmatprep.subr.mxu0 0.0
    %259 = vmatpush1.msra.mxu0 0.0
    %260 = vmatprep.subr.mxu0 0.0
    %261 = vmatpush1.msra.mxu0 0.0
    %262 = vmatprep.subr.mxu0 0.0
    %263 = vmatpush1.msra.mxu0 0.0
    %264 = vmatprep.mubr.f32.mxu0 0.0
    %265 = vmatmul.mubr.f32.gmra.mrb[0].mxu0 %v95
    %v266 = vpop.f32.mrb[0].mxu0
    %v267 = vadd.f32 0.0, %v266
    %v268 = vpop.f32.mrb[0].mxu0
    %269 = vmatprep.mubr.f32.mxu0 0.0
    %270 = vmatmul.mubr.f32.gmra.mrb[0].mxu0 %v98
    %v271 = vpop.f32.mrb[0].mxu0
    %v272 = vadd.f32 0.0, %v271
    %v273 = vpop.f32.mrb[0].mxu0
    %274 = vmatprep.mubr.f32.mxu0 0.0
    %275 = vmatmul.mubr.f32.gmra.mrb[0].mxu0 %v101
    %v276 = vpop.f32.mrb[0].mxu0
    %v277 = vadd.f32 0.0, %v276
    %v278 = vpop.f32.mrb[0].mxu0
    %279 = vmatprep.mubr.f32.mxu0 0.0
    %280 = vmatmul.mubr.f32.gmra.mrb[0].mxu0 %v104
    %v281 = vpop.f32.mrb[0].mxu0
    %v282 = vadd.f32 0.0, %v281
    %v283 = vpop.f32.mrb[0].mxu0
    %284 = vdwg.mxu0
    %s285 = scalar_lea.vmem [#allocation2], 128
    %v286 = vld [vmem:[%s285] sm:$0xff]
    %v287 = vld [vmem:[%s285 + $0x8] sm:$0xff]
    %v288 = vld [vmem:[%s285 + $0x10] sm:$0xff]
    %v289 = vld [vmem:[%s285 + $0x18] sm:$0xff]
    %v290 = vld [vmem:[%s285 + $0x20] sm:$0xff]
    %v291 = vld [vmem:[%s285 + $0x28] sm:$0xff]
    %v292 = vld [vmem:[%s285 + $0x30] sm:$0xff]
    %v293 = vld [vmem:[%s285 + $0x38] sm:$0xff]
    %294 = vmatprep.subr.mxu0 0.0
    %295 = vmatpush1.msra.mxu0 %v286
    %296 = vmatprep.subr.mxu0 0.0
    %297 = vmatpush1.msra.mxu0 %v287
    %298 = vmatprep.subr.mxu0 0.0
    %299 = vmatpush1.msra.mxu0 %v288
    %300 = vmatprep.subr.mxu0 0.0
    %301 = vmatpush1.msra.mxu0 %v289
    %302 = vmatprep.subr.mxu0 0.0
    %303 = vmatpush1.msra.mxu0 %v290
    %304 = vmatprep.subr.mxu0 0.0
    %305 = vmatpush1.msra.mxu0 %v291
    %306 = vmatprep.subr.mxu0 0.0
    %307 = vmatpush1.msra.mxu0 %v292
    %308 = vmatprep.subr.mxu0 0.0
    %309 = vmatpush1.msra.mxu0 %v293
    %310 = vmatprep.subr.mxu0 0.0
    %311 = vmatpush1.msra.mxu0 0.0
    %312 = vmatprep.subr.mxu0 0.0
    %313 = vmatpush1.msra.mxu0 0.0
    %314 = vmatprep.subr.mxu0 0.0
    %315 = vmatpush1.msra.mxu0 0.0
    %316 = vmatprep.subr.mxu0 0.0
    %317 = vmatpush1.msra.mxu0 0.0
    %318 = vmatprep.subr.mxu0 0.0
    %319 = vmatpush1.msra.mxu0 0.0
    %320 = vmatprep.subr.mxu0 0.0
    %321 = vmatpush1.msra.mxu0 0.0
    %322 = vmatprep.subr.mxu0 0.0
    %323 = vmatpush1.msra.mxu0 0.0
    %324 = vmatprep.subr.mxu0 0.0
    %325 = vmatpush1.msra.mxu0 0.0
    %326 = vmatprep.subr.mxu0 0.0
    %327 = vmatpush1.msra.mxu0 0.0
    %328 = vmatprep.subr.mxu0 0.0
    %329 = vmatpush1.msra.mxu0 0.0
    %330 = vmatprep.subr.mxu0 0.0
    %331 = vmatpush1.msra.mxu0 0.0
    %332 = vmatprep.subr.mxu0 0.0
    %333 = vmatpush1.msra.mxu0 0.0
    %334 = vmatprep.subr.mxu0 0.0
    %335 = vmatpush1.msra.mxu0 0.0
    %336 = vmatprep.subr.mxu0 0.0
    %337 = vmatpush1.msra.mxu0 0.0
    %338 = vmatprep.subr.mxu0 0.0
    %339 = vmatpush1.msra.mxu0 0.0
    %340 = vmatprep.subr.mxu0 0.0
    %341 = vmatpush1.msra.mxu0 0.0
    %342 = vmatprep.subr.mxu0 0.0
    %343 = vmatpush1.msra.mxu0 0.0
    %344 = vmatprep.subr.mxu0 0.0
    %345 = vmatpush1.msra.mxu0 0.0
    %346 = vmatprep.subr.mxu0 0.0
    %347 = vmatpush1.msra.mxu0 0.0
    %348 = vmatprep.subr.mxu0 0.0
    %349 = vmatpush1.msra.mxu0 0.0
    %350 = vmatprep.subr.mxu0 0.0
    %351 = vmatpush1.msra.mxu0 0.0
    %352 = vmatprep.subr.mxu0 0.0
    %353 = vmatpush1.msra.mxu0 0.0
    %354 = vmatprep.subr.mxu0 0.0
    %355 = vmatpush1.msra.mxu0 0.0
    %356 = vmatprep.subr.mxu0 0.0
    %357 = vmatpush1.msra.mxu0 0.0
    %358 = vmatprep.mubr.f32.mxu0 0.0
    %359 = vmatmul.mubr.f32.gmra.mrb[0].mxu0 %v95
    %v360 = vpop.f32.mrb[0].mxu0
    %v361 = vadd.f32 0.0, %v360
    %v362 = vpop.f32.mrb[0].mxu0
    %363 = vmatprep.mubr.f32.mxu0 0.0
    %364 = vmatmul.mubr.f32.gmra.mrb[0].mxu0 %v98
    %v365 = vpop.f32.mrb[0].mxu0
    %v366 = vadd.f32 0.0, %v365
    %v367 = vpop.f32.mrb[0].mxu0
    %368 = vmatprep.mubr.f32.mxu0 0.0
    %369 = vmatmul.mubr.f32.gmra.mrb[0].mxu0 %v101
    %v370 = vpop.f32.mrb[0].mxu0
    %v371 = vadd.f32 0.0, %v370
    %v372 = vpop.f32.mrb[0].mxu0
    %373 = vmatprep.mubr.f32.mxu0 0.0
    %374 = vmatmul.mubr.f32.gmra.mrb[0].mxu0 %v104
    %v375 = vpop.f32.mrb[0].mxu0
    %v376 = vadd.f32 0.0, %v375
    %v377 = vpop.f32.mrb[0].mxu0
    %378 = vdwg.mxu0
    %vm379 = vcmask 261120
    %v381 = vsel %vm379, %v77, 0
    %v384 = vsel %vm379, %v78, 0
    %v387 = vsel %vm379, %v79, 0
    %v390 = vsel %vm379, %v80, 0
    %392 = vmatprep.subr.mxu0 0.0
    %393 = vmatpush1.msra.mxu0 %v173
    %394 = vmatprep.subr.mxu0 0.0
    %395 = vmatpush1.msra.mxu0 %v178
    %396 = vmatprep.subr.mxu0 0.0
    %397 = vmatpush1.msra.mxu0 %v183
    %398 = vmatprep.subr.mxu0 0.0
    %399 = vmatpush1.msra.mxu0 %v188
    %400 = vmatprep.subr.mxu0 0.0
    %401 = vmatpush1.msra.mxu0 0.0
    %402 = vmatprep.subr.mxu0 0.0
    %403 = vmatpush1.msra.mxu0 0.0
    %404 = vmatprep.subr.mxu0 0.0
    %405 = vmatpush1.msra.mxu0 0.0
    %406 = vmatprep.subr.mxu0 0.0
    %407 = vmatpush1.msra.mxu0 0.0
    %408 = vmatprep.subr.mxu0 0.0
    %409 = vmatpush1.msra.mxu0 0.0
    %410 = vmatprep.subr.mxu0 0.0
    %411 = vmatpush1.msra.mxu0 0.0
    %412 = vmatprep.subr.mxu0 0.0
    %413 = vmatpush1.msra.mxu0 0.0
    %414 = vmatprep.subr.mxu0 0.0
    %415 = vmatpush1.msra.mxu0 0.0
    %416 = vmatprep.subr.mxu0 0.0
    %417 = vmatpush1.msra.mxu0 0.0
    %418 = vmatprep.subr.mxu0 0.0
    %419 = vmatpush1.msra.mxu0 0.0
    %420 = vmatprep.subr.mxu0 0.0
    %421 = vmatpush1.msra.mxu0 0.0
    %422 = vmatprep.subr.mxu0 0.0
    %423 = vmatpush1.msra.mxu0 0.0
    %424 = vmatprep.subr.mxu0 0.0
    %425 = vmatpush1.msra.mxu0 0.0
    %426 = vmatprep.subr.mxu0 0.0
    %427 = vmatpush1.msra.mxu0 0.0
    %428 = vmatprep.subr.mxu0 0.0
    %429 = vmatpush1.msra.mxu0 0.0
    %430 = vmatprep.subr.mxu0 0.0
    %431 = vmatpush1.msra.mxu0 0.0
    %432 = vmatprep.subr.mxu0 0.0
    %433 = vmatpush1.msra.mxu0 0.0
    %434 = vmatprep.subr.mxu0 0.0
    %435 = vmatpush1.msra.mxu0 0.0
    %436 = vmatprep.subr.mxu0 0.0
    %437 = vmatpush1.msra.mxu0 0.0
    %438 = vmatprep.subr.mxu0 0.0
    %439 = vmatpush1.msra.mxu0 0.0
    %440 = vmatprep.subr.mxu0 0.0
    %441 = vmatpush1.msra.mxu0 0.0
    %442 = vmatprep.subr.mxu0 0.0
    %443 = vmatpush1.msra.mxu0 0.0
    %444 = vmatprep.subr.mxu0 0.0
    %445 = vmatpush1.msra.mxu0 0.0
    %446 = vmatprep.subr.mxu0 0.0
    %447 = vmatpush1.msra.mxu0 0.0
    %448 = vmatprep.subr.mxu0 0.0
    %449 = vmatpush1.msra.mxu0 0.0
    %450 = vmatprep.subr.mxu0 0.0
    %451 = vmatpush1.msra.mxu0 0.0
    %452 = vmatprep.subr.mxu0 0.0
    %453 = vmatpush1.msra.mxu0 0.0
    %454 = vmatprep.subr.mxu0 0.0
    %455 = vmatpush1.msra.mxu0 0.0
    %456 = vmatprep.mubr.f32.mxu0 0.0
    %457 = vmatmul.mubr.f32.gmra.mrb[0].mxu0 %v381
    %v458 = vpop.f32.mrb[0].mxu0
    %v459 = vadd.f32 %v267, %v458
    %v460 = vpop.f32.mrb[0].mxu0
    %461 = vmatprep.mubr.f32.mxu0 0.0
    %462 = vmatmul.mubr.f32.gmra.mrb[0].mxu0 %v384
    %v463 = vpop.f32.mrb[0].mxu0
    %v464 = vadd.f32 %v272, %v463
    %v465 = vpop.f32.mrb[0].mxu0
    %466 = vmatprep.mubr.f32.mxu0 0.0
    %467 = vmatmul.mubr.f32.gmra.mrb[0].mxu0 %v387
    %v468 = vpop.f32.mrb[0].mxu0
    %v469 = vadd.f32 %v277, %v468
    %v470 = vpop.f32.mrb[0].mxu0
    %471 = vmatprep.mubr.f32.mxu0 0.0
    %472 = vmatmul.mubr.f32.gmra.mrb[0].mxu0 %v390
    %v473 = vpop.f32.mrb[0].mxu0
    %v474 = vadd.f32 %v282, %v473
    %v475 = vpop.f32.mrb[0].mxu0
    %476 = vdwg.mxu0
    %v478 = vsel %vm379, %v81, 0
    %v481 = vsel %vm379, %v82, 0
    %v484 = vsel %vm379, %v83, 0
    %v487 = vsel %vm379, %v84, 0
    %489 = vmatprep.subr.mxu0 0.0
    %490 = vmatpush1.msra.mxu0 %v361
    %491 = vmatprep.subr.mxu0 0.0
    %492 = vmatpush1.msra.mxu0 %v366
    %493 = vmatprep.subr.mxu0 0.0
    %494 = vmatpush1.msra.mxu0 %v371
    %495 = vmatprep.subr.mxu0 0.0
    %496 = vmatpush1.msra.mxu0 %v376
    %497 = vmatprep.subr.mxu0 0.0
    %498 = vmatpush1.msra.mxu0 0.0
    %499 = vmatprep.subr.mxu0 0.0
    %500 = vmatpush1.msra.mxu0 0.0
    %501 = vmatprep.subr.mxu0 0.0
    %502 = vmatpush1.msra.mxu0 0.0
    %503 = vmatprep.subr.mxu0 0.0
    %504 = vmatpush1.msra.mxu0 0.0
    %505 = vmatprep.subr.mxu0 0.0
    %506 = vmatpush1.msra.mxu0 0.0
    %507 = vmatprep.subr.mxu0 0.0
    %508 = vmatpush1.msra.mxu0 0.0
    %509 = vmatprep.subr.mxu0 0.0
    %510 = vmatpush1.msra.mxu0 0.0
    %511 = vmatprep.subr.mxu0 0.0
    %512 = vmatpush1.msra.mxu0 0.0
    %513 = vmatprep.subr.mxu0 0.0
    %514 = vmatpush1.msra.mxu0 0.0
    %515 = vmatprep.subr.mxu0 0.0
    %516 = vmatpush1.msra.mxu0 0.0
    %517 = vmatprep.subr.mxu0 0.0
    %518 = vmatpush1.msra.mxu0 0.0
    %519 = vmatprep.subr.mxu0 0.0
    %520 = vmatpush1.msra.mxu0 0.0
    %521 = vmatprep.subr.mxu0 0.0
    %522 = vmatpush1.msra.mxu0 0.0
    %523 = vmatprep.subr.mxu0 0.0
    %524 = vmatpush1.msra.mxu0 0.0
    %525 = vmatprep.subr.mxu0 0.0
    %526 = vmatpush1.msra.mxu0 0.0
    %527 = vmatprep.subr.mxu0 0.0
    %528 = vmatpush1.msra.mxu0 0.0
    %529 = vmatprep.subr.mxu0 0.0
    %530 = vmatpush1.msra.mxu0 0.0
    %531 = vmatprep.subr.mxu0 0.0
    %532 = vmatpush1.msra.mxu0 0.0
    %533 = vmatprep.subr.mxu0 0.0
    %534 = vmatpush1.msra.mxu0 0.0
    %535 = vmatprep.subr.mxu0 0.0
    %536 = vmatpush1.msra.mxu0 0.0
    %537 = vmatprep.subr.mxu0 0.0
    %538 = vmatpush1.msra.mxu0 0.0
    %539 = vmatprep.subr.mxu0 0.0
    %540 = vmatpush1.msra.mxu0 0.0
    %541 = vmatprep.subr.mxu0 0.0
    %542 = vmatpush1.msra.mxu0 0.0
    %543 = vmatprep.subr.mxu0 0.0
    %544 = vmatpush1.msra.mxu0 0.0
    %545 = vmatprep.subr.mxu0 0.0
    %546 = vmatpush1.msra.mxu0 0.0
    %547 = vmatprep.subr.mxu0 0.0
    %548 = vmatpush1.msra.mxu0 0.0
    %549 = vmatprep.subr.mxu0 0.0
    %550 = vmatpush1.msra.mxu0 0.0
    %551 = vmatprep.subr.mxu0 0.0
    %552 = vmatpush1.msra.mxu0 0.0
    %553 = vmatprep.mubr.f32.mxu0 0.0
    %554 = vmatmul.mubr.f32.gmra.mrb[0].mxu0 %v478
    %v555 = vpop.f32.mrb[0].mxu0
    %v556 = vadd.f32 0.0, %v555
    %v557 = vpop.f32.mrb[0].mxu0
    %558 = vmatprep.mubr.f32.mxu0 0.0
    %559 = vmatmul.mubr.f32.gmra.mrb[0].mxu0 %v481
    %v560 = vpop.f32.mrb[0].mxu0
    %v561 = vadd.f32 0.0, %v560
    %v562 = vpop.f32.mrb[0].mxu0
    %563 = vmatprep.mubr.f32.mxu0 0.0
    %564 = vmatmul.mubr.f32.gmra.mrb[0].mxu0 %v484
    %v565 = vpop.f32.mrb[0].mxu0
    %v566 = vadd.f32 0.0, %v565
    %v567 = vpop.f32.mrb[0].mxu0
    %568 = vmatprep.mubr.f32.mxu0 0.0
    %569 = vmatmul.mubr.f32.gmra.mrb[0].mxu0 %v487
    %v570 = vpop.f32.mrb[0].mxu0
    %v571 = vadd.f32 0.0, %v570
    %v572 = vpop.f32.mrb[0].mxu0
    %573 = vdwg.mxu0
    %v574 = vadd.f32 %v459, %v556
    %v575 = vadd.f32 %v464, %v561
    %v576 = vadd.f32 %v469, %v566
    %v577 = vadd.f32 %v474, %v571
    %v578 = vld [vmem:[%s2] sm:$0x1]
    %v580 = vlaneseq
    %v581 = vshrl.u32 %v580, 7
    %v582 = vsub.s32 0, %v581
    %v583 = vrot.slane %v578, %v582
    %v585 = vmul.f32 %v574, %v583
    %v586 = vmul.f32 %v575, %v583
    %v587 = vmul.f32 %v576, %v583
    %v588 = vmul.f32 %v577, %v583
    %v589 = vld [vmem:[%s3] sm:$0x1]
    %v591 = vlaneseq
    %v592 = vshrl.u32 %v591, 7
    %v593 = vsub.s32 0, %v592
    %v594 = vrot.slane %v589, %v593
    %v596 = vadd.f32 %v585, %v594
    %v597 = vadd.f32 %v586, %v594
    %v598 = vadd.f32 %v587, %v594
    %v599 = vadd.f32 %v588, %v594
    %v600 = vmax.f32 %v596, 0.0
    %v601 = vmax.f32 %v597, 0.0
    %v602 = vmax.f32 %v598, 0.0
    %v603 = vmax.f32 %v599, 0.0
    %v604 = vld [vmem:[#allocation5] sm:$0xff]
    %v605 = vld [vmem:[#allocation5 + $0x8] sm:$0xff]
    %v606 = vld [vmem:[#allocation5 + $0x10] sm:$0xff]
    %v607 = vld [vmem:[#allocation5 + $0x18] sm:$0xff]
    %v608 = vld [vmem:[#allocation5 + $0x20] sm:$0xff]
    %v609 = vld [vmem:[#allocation5 + $0x28] sm:$0xff]
    %v610 = vld [vmem:[#allocation5 + $0x30] sm:$0xff]
    %v611 = vld [vmem:[#allocation5 + $0x38] sm:$0xff]
    %v613 = vsel %vm93, %v600, 0
    %v616 = vsel %vm93, %v601, 0
    %v619 = vsel %vm93, %v602, 0
    %v622 = vsel %vm93, %v603, 0
    %624 = vmatprep.subr.mxu0 0.0
    %625 = vmatpush1.msra.mxu0 %v604
    %626 = vmatprep.subr.mxu0 0.0
    %627 = vmatpush1.msra.mxu0 %v605
    %628 = vmatprep.subr.mxu0 0.0
    %629 = vmatpush1.msra.mxu0 %v606
    %630 = vmatprep.subr.mxu0 0.0
    %631 = vmatpush1.msra.mxu0 %v607
    %632 = vmatprep.subr.mxu0 0.0
    %633 = vmatpush1.msra.mxu0 %v608
    %634 = vmatprep.subr.mxu0 0.0
    %635 = vmatpush1.msra.mxu0 %v609
    %636 = vmatprep.subr.mxu0 0.0
    %637 = vmatpush1.msra.mxu0 %v610
    %638 = vmatprep.subr.mxu0 0.0
    %639 = vmatpush1.msra.mxu0 %v611
    %640 = vmatprep.subr.mxu0 0.0
    %641 = vmatpush1.msra.mxu0 0.0
    %642 = vmatprep.subr.mxu0 0.0
    %643 = vmatpush1.msra.mxu0 0.0
    %644 = vmatprep.subr.mxu0 0.0
    %645 = vmatpush1.msra.mxu0 0.0
    %646 = vmatprep.subr.mxu0 0.0
    %647 = vmatpush1.msra.mxu0 0.0
    %648 = vmatprep.subr.mxu0 0.0
    %649 = vmatpush1.msra.mxu0 0.0
    %650 = vmatprep.subr.mxu0 0.0
    %651 = vmatpush1.msra.mxu0 0.0
    %652 = vmatprep.subr.mxu0 0.0
    %653 = vmatpush1.msra.mxu0 0.0
    %654 = vmatprep.subr.mxu0 0.0
    %655 = vmatpush1.msra.mxu0 0.0
    %656 = vmatprep.subr.mxu0 0.0
    %657 = vmatpush1.msra.mxu0 0.0
    %658 = vmatprep.subr.mxu0 0.0
    %659 = vmatpush1.msra.mxu0 0.0
    %660 = vmatprep.subr.mxu0 0.0
    %661 = vmatpush1.msra.mxu0 0.0
    %662 = vmatprep.subr.mxu0 0.0
    %663 = vmatpush1.msra.mxu0 0.0
    %664 = vmatprep.subr.mxu0 0.0
    %665 = vmatpush1.msra.mxu0 0.0
    %666 = vmatprep.subr.mxu0 0.0
    %667 = vmatpush1.msra.mxu0 0.0
    %668 = vmatprep.subr.mxu0 0.0
    %669 = vmatpush1.msra.mxu0 0.0
    %670 = vmatprep.subr.mxu0 0.0
    %671 = vmatpush1.msra.mxu0 0.0
    %672 = vmatprep.subr.mxu0 0.0
    %673 = vmatpush1.msra.mxu0 0.0
    %674 = vmatprep.subr.mxu0 0.0
    %675 = vmatpush1.msra.mxu0 0.0
    %676 = vmatprep.subr.mxu0 0.0
    %677 = vmatpush1.msra.mxu0 0.0
    %678 = vmatprep.subr.mxu0 0.0
    %679 = vmatpush1.msra.mxu0 0.0
    %680 = vmatprep.subr.mxu0 0.0
    %681 = vmatpush1.msra.mxu0 0.0
    %682 = vmatprep.subr.mxu0 0.0
    %683 = vmatpush1.msra.mxu0 0.0
    %684 = vmatprep.subr.mxu0 0.0
    %685 = vmatpush1.msra.mxu0 0.0
    %686 = vmatprep.subr.mxu0 0.0
    %687 = vmatpush1.msra.mxu0 0.0
    %688 = vmatprep.mubr.f32.mxu0 0.0
    %689 = vmatmul.mubr.f32.gmra.mrb[0].mxu0 %v613
    %v690 = vpop.f32.mrb[0].mxu0
    %v691 = vadd.f32 0.0, %v690
    %v692 = vpop.f32.mrb[0].mxu0
    %693 = vmatprep.mubr.f32.mxu0 0.0
    %694 = vmatmul.mubr.f32.gmra.mrb[0].mxu0 %v616
    %v695 = vpop.f32.mrb[0].mxu0
    %v696 = vadd.f32 0.0, %v695
    %v697 = vpop.f32.mrb[0].mxu0
    %698 = vmatprep.mubr.f32.mxu0 0.0
    %699 = vmatmul.mubr.f32.gmra.mrb[0].mxu0 %v619
    %v700 = vpop.f32.mrb[0].mxu0
    %v701 = vadd.f32 0.0, %v700
    %v702 = vpop.f32.mrb[0].mxu0
    %703 = vmatprep.mubr.f32.mxu0 0.0
    %704 = vmatmul.mubr.f32.gmra.mrb[0].mxu0 %v622
    %v705 = vpop.f32.mrb[0].mxu0
    %v706 = vadd.f32 0.0, %v705
    %v707 = vpop.f32.mrb[0].mxu0
    %708 = vdwg.mxu0
    %s709 = scalar_lea.vmem [#allocation5], 64
    %v710 = vld [vmem:[%s709] sm:$0xff]
    %v711 = vld [vmem:[%s709 + $0x8] sm:$0xff]
    %v712 = vld [vmem:[%s709 + $0x10] sm:$0xff]
    %v713 = vld [vmem:[%s709 + $0x18] sm:$0xff]
    %v714 = vld [vmem:[%s709 + $0x20] sm:$0xff]
    %v715 = vld [vmem:[%s709 + $0x28] sm:$0xff]
    %v716 = vld [vmem:[%s709 + $0x30] sm:$0xff]
    %v717 = vld [vmem:[%s709 + $0x38] sm:$0xff]
    %718 = vmatprep.subr.mxu0 0.0
    %719 = vmatpush1.msra.mxu0 %v710
    %720 = vmatprep.subr.mxu0 0.0
    %721 = vmatpush1.msra.mxu0 %v711
    %722 = vmatprep.subr.mxu0 0.0
    %723 = vmatpush1.msra.mxu0 %v712
    %724 = vmatprep.subr.mxu0 0.0
    %725 = vmatpush1.msra.mxu0 %v713
    %726 = vmatprep.subr.mxu0 0.0
    %727 = vmatpush1.msra.mxu0 %v714
    %728 = vmatprep.subr.mxu0 0.0
    %729 = vmatpush1.msra.mxu0 %v715
    %730 = vmatprep.subr.mxu0 0.0
    %731 = vmatpush1.msra.mxu0 %v716
    %732 = vmatprep.subr.mxu0 0.0
    %733 = vmatpush1.msra.mxu0 %v717
    %734 = vmatprep.subr.mxu0 0.0
    %735 = vmatpush1.msra.mxu0 0.0
    %736 = vmatprep.subr.mxu0 0.0
    %737 = vmatpush1.msra.mxu0 0.0
    %738 = vmatprep.subr.mxu0 0.0
    %739 = vmatpush1.msra.mxu0 0.0
    %740 = vmatprep.subr.mxu0 0.0
    %741 = vmatpush1.msra.mxu0 0.0
    %742 = vmatprep.subr.mxu0 0.0
    %743 = vmatpush1.msra.mxu0 0.0
    %744 = vmatprep.subr.mxu0 0.0
    %745 = vmatpush1.msra.mxu0 0.0
    %746 = vmatprep.subr.mxu0 0.0
    %747 = vmatpush1.msra.mxu0 0.0
    %748 = vmatprep.subr.mxu0 0.0
    %749 = vmatpush1.msra.mxu0 0.0
    %750 = vmatprep.subr.mxu0 0.0
    %751 = vmatpush1.msra.mxu0 0.0
    %752 = vmatprep.subr.mxu0 0.0
    %753 = vmatpush1.msra.mxu0 0.0
    %754 = vmatprep.subr.mxu0 0.0
    %755 = vmatpush1.msra.mxu0 0.0
    %756 = vmatprep.subr.mxu0 0.0
    %757 = vmatpush1.msra.mxu0 0.0
    %758 = vmatprep.subr.mxu0 0.0
    %759 = vmatpush1.msra.mxu0 0.0
    %760 = vmatprep.subr.mxu0 0.0
    %761 = vmatpush1.msra.mxu0 0.0
    %762 = vmatprep.subr.mxu0 0.0
    %763 = vmatpush1.msra.mxu0 0.0
    %764 = vmatprep.subr.mxu0 0.0
    %765 = vmatpush1.msra.mxu0 0.0
    %766 = vmatprep.subr.mxu0 0.0
    %767 = vmatpush1.msra.mxu0 0.0
    %768 = vmatprep.subr.mxu0 0.0
    %769 = vmatpush1.msra.mxu0 0.0
    %770 = vmatprep.subr.mxu0 0.0
    %771 = vmatpush1.msra.mxu0 0.0
    %772 = vmatprep.subr.mxu0 0.0
    %773 = vmatpush1.msra.mxu0 0.0
    %774 = vmatprep.subr.mxu0 0.0
    %775 = vmatpush1.msra.mxu0 0.0
    %776 = vmatprep.subr.mxu0 0.0
    %777 = vmatpush1.msra.mxu0 0.0
    %778 = vmatprep.subr.mxu0 0.0
    %779 = vmatpush1.msra.mxu0 0.0
    %780 = vmatprep.subr.mxu0 0.0
    %781 = vmatpush1.msra.mxu0 0.0
    %782 = vmatprep.mubr.f32.mxu0 0.0
    %783 = vmatmul.mubr.f32.gmra.mrb[0].mxu0 %v613
    %v784 = vpop.f32.mrb[0].mxu0
    %v785 = vadd.f32 0.0, %v784
    %v786 = vpop.f32.mrb[0].mxu0
    %787 = vmatprep.mubr.f32.mxu0 0.0
    %788 = vmatmul.mubr.f32.gmra.mrb[0].mxu0 %v616
    %v789 = vpop.f32.mrb[0].mxu0
    %v790 = vadd.f32 0.0, %v789
    %v791 = vpop.f32.mrb[0].mxu0
    %792 = vmatprep.mubr.f32.mxu0 0.0
    %793 = vmatmul.mubr.f32.gmra.mrb[0].mxu0 %v619
    %v794 = vpop.f32.mrb[0].mxu0
    %v795 = vadd.f32 0.0, %v794
    %v796 = vpop.f32.mrb[0].mxu0
    %797 = vmatprep.mubr.f32.mxu0 0.0
    %798 = vmatmul.mubr.f32.gmra.mrb[0].mxu0 %v622
    %v799 = vpop.f32.mrb[0].mxu0
    %v800 = vadd.f32 0.0, %v799
    %v801 = vpop.f32.mrb[0].mxu0
    %802 = vdwg.mxu0
    %s803 = scalar_lea.vmem [#allocation5], 128
    %v804 = vld [vmem:[%s803] sm:$0xff]
    %v805 = vld [vmem:[%s803 + $0x8] sm:$0xff]
    %v806 = vld [vmem:[%s803 + $0x10] sm:$0xff]
    %v807 = vld [vmem:[%s803 + $0x18] sm:$0xff]
    %v808 = vld [vmem:[%s803 + $0x20] sm:$0xff]
    %v809 = vld [vmem:[%s803 + $0x28] sm:$0xff]
    %v810 = vld [vmem:[%s803 + $0x30] sm:$0xff]
    %v811 = vld [vmem:[%s803 + $0x38] sm:$0xff]
    %812 = vmatprep.subr.mxu0 0.0
    %813 = vmatpush1.msra.mxu0 %v804
    %814 = vmatprep.subr.mxu0 0.0
    %815 = vmatpush1.msra.mxu0 %v805
    %816 = vmatprep.subr.mxu0 0.0
    %817 = vmatpush1.msra.mxu0 %v806
    %818 = vmatprep.subr.mxu0 0.0
    %819 = vmatpush1.msra.mxu0 %v807
    %820 = vmatprep.subr.mxu0 0.0
    %821 = vmatpush1.msra.mxu0 %v808
    %822 = vmatprep.subr.mxu0 0.0
    %823 = vmatpush1.msra.mxu0 %v809
    %824 = vmatprep.subr.mxu0 0.0
    %825 = vmatpush1.msra.mxu0 %v810
    %826 = vmatprep.subr.mxu0 0.0
    %827 = vmatpush1.msra.mxu0 %v811
    %828 = vmatprep.subr.mxu0 0.0
    %829 = vmatpush1.msra.mxu0 0.0
    %830 = vmatprep.subr.mxu0 0.0
    %831 = vmatpush1.msra.mxu0 0.0
    %832 = vmatprep.subr.mxu0 0.0
    %833 = vmatpush1.msra.mxu0 0.0
    %834 = vmatprep.subr.mxu0 0.0
    %835 = vmatpush1.msra.mxu0 0.0
    %836 = vmatprep.subr.mxu0 0.0
    %837 = vmatpush1.msra.mxu0 0.0
    %838 = vmatprep.subr.mxu0 0.0
    %839 = vmatpush1.msra.mxu0 0.0
    %840 = vmatprep.subr.mxu0 0.0
    %841 = vmatpush1.msra.mxu0 0.0
    %842 = vmatprep.subr.mxu0 0.0
    %843 = vmatpush1.msra.mxu0 0.0
    %844 = vmatprep.subr.mxu0 0.0
    %845 = vmatpush1.msra.mxu0 0.0
    %846 = vmatprep.subr.mxu0 0.0
    %847 = vmatpush1.msra.mxu0 0.0
    %848 = vmatprep.subr.mxu0 0.0
    %849 = vmatpush1.msra.mxu0 0.0
    %850 = vmatprep.subr.mxu0 0.0
    %851 = vmatpush1.msra.mxu0 0.0
    %852 = vmatprep.subr.mxu0 0.0
    %853 = vmatpush1.msra.mxu0 0.0
    %854 = vmatprep.subr.mxu0 0.0
    %855 = vmatpush1.msra.mxu0 0.0
    %856 = vmatprep.subr.mxu0 0.0
    %857 = vmatpush1.msra.mxu0 0.0
    %858 = vmatprep.subr.mxu0 0.0
    %859 = vmatpush1.msra.mxu0 0.0
    %860 = vmatprep.subr.mxu0 0.0
    %861 = vmatpush1.msra.mxu0 0.0
    %862 = vmatprep.subr.mxu0 0.0
    %863 = vmatpush1.msra.mxu0 0.0
    %864 = vmatprep.subr.mxu0 0.0
    %865 = vmatpush1.msra.mxu0 0.0
    %866 = vmatprep.subr.mxu0 0.0
    %867 = vmatpush1.msra.mxu0 0.0
    %868 = vmatprep.subr.mxu0 0.0
    %869 = vmatpush1.msra.mxu0 0.0
    %870 = vmatprep.subr.mxu0 0.0
    %871 = vmatpush1.msra.mxu0 0.0
    %872 = vmatprep.subr.mxu0 0.0
    %873 = vmatpush1.msra.mxu0 0.0
    %874 = vmatprep.subr.mxu0 0.0
    %875 = vmatpush1.msra.mxu0 0.0
    %876 = vmatprep.mubr.f32.mxu0 0.0
    %877 = vmatmul.mubr.f32.gmra.mrb[0].mxu0 %v613
    %v878 = vpop.f32.mrb[0].mxu0
    %v879 = vadd.f32 0.0, %v878
    %v880 = vpop.f32.mrb[0].mxu0
    %881 = vmatprep.mubr.f32.mxu0 0.0
    %882 = vmatmul.mubr.f32.gmra.mrb[0].mxu0 %v616
    %v883 = vpop.f32.mrb[0].mxu0
    %v884 = vadd.f32 0.0, %v883
    %v885 = vpop.f32.mrb[0].mxu0
    %886 = vmatprep.mubr.f32.mxu0 0.0
    %887 = vmatmul.mubr.f32.gmra.mrb[0].mxu0 %v619
    %v888 = vpop.f32.mrb[0].mxu0
    %v889 = vadd.f32 0.0, %v888
    %v890 = vpop.f32.mrb[0].mxu0
    %891 = vmatprep.mubr.f32.mxu0 0.0
    %892 = vmatmul.mubr.f32.gmra.mrb[0].mxu0 %v622
    %v893 = vpop.f32.mrb[0].mxu0
    %v894 = vadd.f32 0.0, %v893
    %v895 = vpop.f32.mrb[0].mxu0
    %896 = vdwg.mxu0
    %897 = vmatprep.subr.mxu0 0.0
    %898 = vmatpush1.msra.mxu0 %v691
    %899 = vmatprep.subr.mxu0 0.0
    %900 = vmatpush1.msra.mxu0 %v696
    %901 = vmatprep.subr.mxu0 0.0
    %902 = vmatpush1.msra.mxu0 %v701
    %903 = vmatprep.subr.mxu0 0.0
    %904 = vmatpush1.msra.mxu0 %v706
    %905 = vmatprep.subr.mxu0 0.0
    %906 = vmatpush1.msra.mxu0 0.0
    %907 = vmatprep.subr.mxu0 0.0
    %908 = vmatpush1.msra.mxu0 0.0
    %909 = vmatprep.subr.mxu0 0.0
    %910 = vmatpush1.msra.mxu0 0.0
    %911 = vmatprep.subr.mxu0 0.0
    %912 = vmatpush1.msra.mxu0 0.0
    %913 = vmatprep.subr.mxu0 0.0
    %914 = vmatpush1.msra.mxu0 0.0
    %915 = vmatprep.subr.mxu0 0.0
    %916 = vmatpush1.msra.mxu0 0.0
    %917 = vmatprep.subr.mxu0 0.0
    %918 = vmatpush1.msra.mxu0 0.0
    %919 = vmatprep.subr.mxu0 0.0
    %920 = vmatpush1.msra.mxu0 0.0
    %921 = vmatprep.subr.mxu0 0.0
    %922 = vmatpush1.msra.mxu0 0.0
    %923 = vmatprep.subr.mxu0 0.0
    %924 = vmatpush1.msra.mxu0 0.0
    %925 = vmatprep.subr.mxu0 0.0
    %926 = vmatpush1.msra.mxu0 0.0
    %927 = vmatprep.subr.mxu0 0.0
    %928 = vmatpush1.msra.mxu0 0.0
    %929 = vmatprep.subr.mxu0 0.0
    %930 = vmatpush1.msra.mxu0 0.0
    %931 = vmatprep.subr.mxu0 0.0
    %932 = vmatpush1.msra.mxu0 0.0
    %933 = vmatprep.subr.mxu0 0.0
    %934 = vmatpush1.msra.mxu0 0.0
    %935 = vmatprep.subr.mxu0 0.0
    %936 = vmatpush1.msra.mxu0 0.0
    %937 = vmatprep.subr.mxu0 0.0
    %938 = vmatpush1.msra.mxu0 0.0
    %939 = vmatprep.subr.mxu0 0.0
    %940 = vmatpush1.msra.mxu0 0.0
    %941 = vmatprep.subr.mxu0 0.0
    %942 = vmatpush1.msra.mxu0 0.0
    %943 = vmatprep.subr.mxu0 0.0
    %944 = vmatpush1.msra.mxu0 0.0
    %945 = vmatprep.subr.mxu0 0.0
    %946 = vmatpush1.msra.mxu0 0.0
    %947 = vmatprep.subr.mxu0 0.0
    %948 = vmatpush1.msra.mxu0 0.0
    %949 = vmatprep.subr.mxu0 0.0
    %950 = vmatpush1.msra.mxu0 0.0
    %951 = vmatprep.subr.mxu0 0.0
    %952 = vmatpush1.msra.mxu0 0.0
    %953 = vmatprep.subr.mxu0 0.0
    %954 = vmatpush1.msra.mxu0 0.0
    %955 = vmatprep.subr.mxu0 0.0
    %956 = vmatpush1.msra.mxu0 0.0
    %957 = vmatprep.subr.mxu0 0.0
    %958 = vmatpush1.msra.mxu0 0.0
    %959 = vmatprep.subr.mxu0 0.0
    %960 = vmatpush1.msra.mxu0 0.0
    %961 = vmatprep.mubr.f32.mxu0 0.0
    %962 = vmatmul.mubr.f32.gmra.mrb[0].mxu0 %v381
    %v963 = vpop.f32.mrb[0].mxu0
    %v964 = vadd.f32 %v785, %v963
    %v965 = vpop.f32.mrb[0].mxu0
    %966 = vmatprep.mubr.f32.mxu0 0.0
    %967 = vmatmul.mubr.f32.gmra.mrb[0].mxu0 %v384
    %v968 = vpop.f32.mrb[0].mxu0
    %v969 = vadd.f32 %v790, %v968
    %v970 = vpop.f32.mrb[0].mxu0
    %971 = vmatprep.mubr.f32.mxu0 0.0
    %972 = vmatmul.mubr.f32.gmra.mrb[0].mxu0 %v387
    %v973 = vpop.f32.mrb[0].mxu0
    %v974 = vadd.f32 %v795, %v973
    %v975 = vpop.f32.mrb[0].mxu0
    %976 = vmatprep.mubr.f32.mxu0 0.0
    %977 = vmatmul.mubr.f32.gmra.mrb[0].mxu0 %v390
    %v978 = vpop.f32.mrb[0].mxu0
    %v979 = vadd.f32 %v800, %v978
    %v980 = vpop.f32.mrb[0].mxu0
    %981 = vdwg.mxu0
    %982 = vmatprep.subr.mxu0 0.0
    %983 = vmatpush1.msra.mxu0 %v879
    %984 = vmatprep.subr.mxu0 0.0
    %985 = vmatpush1.msra.mxu0 %v884
    %986 = vmatprep.subr.mxu0 0.0
    %987 = vmatpush1.msra.mxu0 %v889
    %988 = vmatprep.subr.mxu0 0.0
    %989 = vmatpush1.msra.mxu0 %v894
    %990 = vmatprep.subr.mxu0 0.0
    %991 = vmatpush1.msra.mxu0 0.0
    %992 = vmatprep.subr.mxu0 0.0
    %993 = vmatpush1.msra.mxu0 0.0
    %994 = vmatprep.subr.mxu0 0.0
    %995 = vmatpush1.msra.mxu0 0.0
    %996 = vmatprep.subr.mxu0 0.0
    %997 = vmatpush1.msra.mxu0 0.0
    %998 = vmatprep.subr.mxu0 0.0
    %999 = vmatpush1.msra.mxu0 0.0
    %1000 = vmatprep.subr.mxu0 0.0
    %1001 = vmatpush1.msra.mxu0 0.0
    %1002 = vmatprep.subr.mxu0 0.0
    %1003 = vmatpush1.msra.mxu0 0.0
    %1004 = vmatprep.subr.mxu0 0.0
    %1005 = vmatpush1.msra.mxu0 0.0
    %1006 = vmatprep.subr.mxu0 0.0
    %1007 = vmatpush1.msra.mxu0 0.0
    %1008 = vmatprep.subr.mxu0 0.0
    %1009 = vmatpush1.msra.mxu0 0.0
    %1010 = vmatprep.subr.mxu0 0.0
    %1011 = vmatpush1.msra.mxu0 0.0
    %1012 = vmatprep.subr.mxu0 0.0
    %1013 = vmatpush1.msra.mxu0 0.0
    %1014 = vmatprep.subr.mxu0 0.0
    %1015 = vmatpush1.msra.mxu0 0.0
    %1016 = vmatprep.subr.mxu0 0.0
    %1017 = vmatpush1.msra.mxu0 0.0
    %1018 = vmatprep.subr.mxu0 0.0
    %1019 = vmatpush1.msra.mxu0 0.0
    %1020 = vmatprep.subr.mxu0 0.0
    %1021 = vmatpush1.msra.mxu0 0.0
    %1022 = vmatprep.subr.mxu0 0.0
    %1023 = vmatpush1.msra.mxu0 0.0
    %1024 = vmatprep.subr.mxu0 0.0
    %1025 = vmatpush1.msra.mxu0 0.0
    %1026 = vmatprep.subr.mxu0 0.0
    %1027 = vmatpush1.msra.mxu0 0.0
    %1028 = vmatprep.subr.mxu0 0.0
    %1029 = vmatpush1.msra.mxu0 0.0
    %1030 = vmatprep.subr.mxu0 0.0
    %1031 = vmatpush1.msra.mxu0 0.0
    %1032 = vmatprep.subr.mxu0 0.0
    %1033 = vmatpush1.msra.mxu0 0.0
    %1034 = vmatprep.subr.mxu0 0.0
    %1035 = vmatpush1.msra.mxu0 0.0
    %1036 = vmatprep.subr.mxu0 0.0
    %1037 = vmatpush1.msra.mxu0 0.0
    %1038 = vmatprep.subr.mxu0 0.0
    %1039 = vmatpush1.msra.mxu0 0.0
    %1040 = vmatprep.subr.mxu0 0.0
    %1041 = vmatpush1.msra.mxu0 0.0
    %1042 = vmatprep.subr.mxu0 0.0
    %1043 = vmatpush1.msra.mxu0 0.0
    %1044 = vmatprep.subr.mxu0 0.0
    %1045 = vmatpush1.msra.mxu0 0.0
    %1046 = vmatprep.mubr.f32.mxu0 0.0
    %1047 = vmatmul.mubr.f32.gmra.mrb[0].mxu0 %v478
    %v1048 = vpop.f32.mrb[0].mxu0
    %v1049 = vadd.f32 0.0, %v1048
    %v1050 = vpop.f32.mrb[0].mxu0
    %1051 = vmatprep.mubr.f32.mxu0 0.0
    %1052 = vmatmul.mubr.f32.gmra.mrb[0].mxu0 %v481
    %v1053 = vpop.f32.mrb[0].mxu0
    %v1054 = vadd.f32 0.0, %v1053
    %v1055 = vpop.f32.mrb[0].mxu0
    %1056 = vmatprep.mubr.f32.mxu0 0.0
    %1057 = vmatmul.mubr.f32.gmra.mrb[0].mxu0 %v484
    %v1058 = vpop.f32.mrb[0].mxu0
    %v1059 = vadd.f32 0.0, %v1058
    %v1060 = vpop.f32.mrb[0].mxu0
    %1061 = vmatprep.mubr.f32.mxu0 0.0
    %1062 = vmatmul.mubr.f32.gmra.mrb[0].mxu0 %v487
    %v1063 = vpop.f32.mrb[0].mxu0
    %v1064 = vadd.f32 0.0, %v1063
    %v1065 = vpop.f32.mrb[0].mxu0
    %1066 = vdwg.mxu0
    %v1067 = vadd.f32 %v964, %v1049
    %v1068 = vadd.f32 %v969, %v1054
    %v1069 = vadd.f32 %v974, %v1059
    %v1070 = vadd.f32 %v979, %v1064
    %v1071 = vld [vmem:[%s5] sm:$0x1]
    %v1073 = vlaneseq
    %v1074 = vshrl.u32 %v1073, 7
    %v1075 = vsub.s32 0, %v1074
    %v1076 = vrot.slane %v1071, %v1075
    %v1078 = vmul.f32 %v1067, %v1076
    %v1079 = vmul.f32 %v1068, %v1076
    %v1080 = vmul.f32 %v1069, %v1076
    %v1081 = vmul.f32 %v1070, %v1076
    %v1082 = vld [vmem:[%s6] sm:$0x1]
    %v1084 = vlaneseq
    %v1085 = vshrl.u32 %v1084, 7
    %v1086 = vsub.s32 0, %v1085
    %v1087 = vrot.slane %v1082, %v1086
    %v1089 = vadd.f32 %v1078, %v1087
    %v1090 = vadd.f32 %v1079, %v1087
    %v1091 = vadd.f32 %v1080, %v1087
    %v1092 = vadd.f32 %v1081, %v1087
    %v1093 = vld [vmem:[%s10] sm:$0xff]
    %v1094 = vld [vmem:[%s10 + $0x8] sm:$0xff]
    %v1095 = vld [vmem:[%s10 + $0x10] sm:$0xff]
    %v1096 = vld [vmem:[%s10 + $0x18] sm:$0xff]
    %v1097 = vld [vmem:[%s10 + $0x20] sm:$0xff]
    %v1098 = vld [vmem:[%s10 + $0x28] sm:$0xff]
    %v1099 = vld [vmem:[%s10 + $0x30] sm:$0xff]
    %v1100 = vld [vmem:[%s10 + $0x38] sm:$0xff]
    %v1102 = vsel %vm93, %v1089, 0
    %v1105 = vsel %vm93, %v1090, 0
    %v1108 = vsel %vm93, %v1091, 0
    %v1111 = vsel %vm93, %v1092, 0
    %1113 = vmatprep.subr.mxu0 0.0
    %1114 = vmatpush1.msra.mxu0 %v1093
    %1115 = vmatprep.subr.mxu0 0.0
    %1116 = vmatpush1.msra.mxu0 %v1094
    %1117 = vmatprep.subr.mxu0 0.0
    %1118 = vmatpush1.msra.mxu0 %v1095
    %1119 = vmatprep.subr.mxu0 0.0
    %1120 = vmatpush1.msra.mxu0 %v1096
    %1121 = vmatprep.subr.mxu0 0.0
    %1122 = vmatpush1.msra.mxu0 %v1097
    %1123 = vmatprep.subr.mxu0 0.0
    %1124 = vmatpush1.msra.mxu0 %v1098
    %1125 = vmatprep.subr.mxu0 0.0
    %1126 = vmatpush1.msra.mxu0 %v1099
    %1127 = vmatprep.subr.mxu0 0.0
    %1128 = vmatpush1.msra.mxu0 %v1100
    %1129 = vmatprep.subr.mxu0 0.0
    %1130 = vmatpush1.msra.mxu0 0.0
    %1131 = vmatprep.subr.mxu0 0.0
    %1132 = vmatpush1.msra.mxu0 0.0
    %1133 = vmatprep.subr.mxu0 0.0
    %1134 = vmatpush1.msra.mxu0 0.0
    %1135 = vmatprep.subr.mxu0 0.0
    %1136 = vmatpush1.msra.mxu0 0.0
    %1137 = vmatprep.subr.mxu0 0.0
    %1138 = vmatpush1.msra.mxu0 0.0
    %1139 = vmatprep.subr.mxu0 0.0
    %1140 = vmatpush1.msra.mxu0 0.0
    %1141 = vmatprep.subr.mxu0 0.0
    %1142 = vmatpush1.msra.mxu0 0.0
    %1143 = vmatprep.subr.mxu0 0.0
    %1144 = vmatpush1.msra.mxu0 0.0
    %1145 = vmatprep.subr.mxu0 0.0
    %1146 = vmatpush1.msra.mxu0 0.0
    %1147 = vmatprep.subr.mxu0 0.0
    %1148 = vmatpush1.msra.mxu0 0.0
    %1149 = vmatprep.subr.mxu0 0.0
    %1150 = vmatpush1.msra.mxu0 0.0
    %1151 = vmatprep.subr.mxu0 0.0
    %1152 = vmatpush1.msra.mxu0 0.0
    %1153 = vmatprep.subr.mxu0 0.0
    %1154 = vmatpush1.msra.mxu0 0.0
    %1155 = vmatprep.subr.mxu0 0.0
    %1156 = vmatpush1.msra.mxu0 0.0
    %1157 = vmatprep.subr.mxu0 0.0
    %1158 = vmatpush1.msra.mxu0 0.0
    %1159 = vmatprep.subr.mxu0 0.0
    %1160 = vmatpush1.msra.mxu0 0.0
    %1161 = vmatprep.subr.mxu0 0.0
    %1162 = vmatpush1.msra.mxu0 0.0
    %1163 = vmatprep.subr.mxu0 0.0
    %1164 = vmatpush1.msra.mxu0 0.0
    %1165 = vmatprep.subr.mxu0 0.0
    %1166 = vmatpush1.msra.mxu0 0.0
    %1167 = vmatprep.subr.mxu0 0.0
    %1168 = vmatpush1.msra.mxu0 0.0
    %1169 = vmatprep.subr.mxu0 0.0
    %1170 = vmatpush1.msra.mxu0 0.0
    %1171 = vmatprep.subr.mxu0 0.0
    %1172 = vmatpush1.msra.mxu0 0.0
    %1173 = vmatprep.subr.mxu0 0.0
    %1174 = vmatpush1.msra.mxu0 0.0
    %1175 = vmatprep.subr.mxu0 0.0
    %1176 = vmatpush1.msra.mxu0 0.0
    %1177 = vmatprep.mubr.f32.mxu0 0.0
    %1178 = vmatmul.mubr.f32.gmra.mrb[0].mxu0 %v1102
    %v1179 = vpop.f32.mrb[0].mxu0
    %v1180 = vadd.f32 0.0, %v1179
    %v1181 = vpop.f32.mrb[0].mxu0
    %1182 = vmatprep.mubr.f32.mxu0 0.0
    %1183 = vmatmul.mubr.f32.gmra.mrb[0].mxu0 %v1105
    %v1184 = vpop.f32.mrb[0].mxu0
    %v1185 = vadd.f32 0.0, %v1184
    %v1186 = vpop.f32.mrb[0].mxu0
    %1187 = vmatprep.mubr.f32.mxu0 0.0
    %1188 = vmatmul.mubr.f32.gmra.mrb[0].mxu0 %v1108
    %v1189 = vpop.f32.mrb[0].mxu0
    %v1190 = vadd.f32 0.0, %v1189
    %v1191 = vpop.f32.mrb[0].mxu0
    %1192 = vmatprep.mubr.f32.mxu0 0.0
    %1193 = vmatmul.mubr.f32.gmra.mrb[0].mxu0 %v1111
    %v1194 = vpop.f32.mrb[0].mxu0
    %v1195 = vadd.f32 0.0, %v1194
    %v1196 = vpop.f32.mrb[0].mxu0
    %1197 = vdwg.mxu0
    %v1198 = vld [vmem:[%s9] sm:$0x3]
    %v1200 = vsel %vm379, %v1198, 0
    %1202 = vmatprep.subr.mxu0 0.0
    %1203 = vmatpush1.msra.mxu0 %v1180
    %1204 = vmatprep.subr.mxu0 0.0
    %1205 = vmatpush1.msra.mxu0 %v1185
    %1206 = vmatprep.subr.mxu0 0.0
    %1207 = vmatpush1.msra.mxu0 %v1190
    %1208 = vmatprep.subr.mxu0 0.0
    %1209 = vmatpush1.msra.mxu0 %v1195
    %1210 = vmatprep.subr.mxu0 0.0
    %1211 = vmatpush1.msra.mxu0 0.0
    %1212 = vmatprep.subr.mxu0 0.0
    %1213 = vmatpush1.msra.mxu0 0.0
    %1214 = vmatprep.subr.mxu0 0.0
    %1215 = vmatpush1.msra.mxu0 0.0
    %1216 = vmatprep.subr.mxu0 0.0
    %1217 = vmatpush1.msra.mxu0 0.0
    %1218 = vmatprep.subr.mxu0 0.0
    %1219 = vmatpush1.msra.mxu0 0.0
    %1220 = vmatprep.subr.mxu0 0.0
    %1221 = vmatpush1.msra.mxu0 0.0
    %1222 = vmatprep.subr.mxu0 0.0
    %1223 = vmatpush1.msra.mxu0 0.0
    %1224 = vmatprep.subr.mxu0 0.0
    %1225 = vmatpush1.msra.mxu0 0.0
    %1226 = vmatprep.subr.mxu0 0.0
    %1227 = vmatpush1.msra.mxu0 0.0
    %1228 = vmatprep.subr.mxu0 0.0
    %1229 = vmatpush1.msra.mxu0 0.0
    %1230 = vmatprep.subr.mxu0 0.0
    %1231 = vmatpush1.msra.mxu0 0.0
    %1232 = vmatprep.subr.mxu0 0.0
    %1233 = vmatpush1.msra.mxu0 0.0
    %1234 = vmatprep.subr.mxu0 0.0
    %1235 = vmatpush1.msra.mxu0 0.0
    %1236 = vmatprep.subr.mxu0 0.0
    %1237 = vmatpush1.msra.mxu0 0.0
    %1238 = vmatprep.subr.mxu0 0.0
    %1239 = vmatpush1.msra.mxu0 0.0
    %1240 = vmatprep.subr.mxu0 0.0
    %1241 = vmatpush1.msra.mxu0 0.0
    %1242 = vmatprep.subr.mxu0 0.0
    %1243 = vmatpush1.msra.mxu0 0.0
    %1244 = vmatprep.subr.mxu0 0.0
    %1245 = vmatpush1.msra.mxu0 0.0
    %1246 = vmatprep.subr.mxu0 0.0
    %1247 = vmatpush1.msra.mxu0 0.0
    %1248 = vmatprep.subr.mxu0 0.0
    %1249 = vmatpush1.msra.mxu0 0.0
    %1250 = vmatprep.subr.mxu0 0.0
    %1251 = vmatpush1.msra.mxu0 0.0
    %1252 = vmatprep.subr.mxu0 0.0
    %1253 = vmatpush1.msra.mxu0 0.0
    %1254 = vmatprep.subr.mxu0 0.0
    %1255 = vmatpush1.msra.mxu0 0.0
    %1256 = vmatprep.subr.mxu0 0.0
    %1257 = vmatpush1.msra.mxu0 0.0
    %1258 = vmatprep.subr.mxu0 0.0
    %1259 = vmatpush1.msra.mxu0 0.0
    %1260 = vmatprep.subr.mxu0 0.0
    %1261 = vmatpush1.msra.mxu0 0.0
    %1262 = vmatprep.subr.mxu0 0.0
    %1263 = vmatpush1.msra.mxu0 0.0
    %1264 = vmatprep.subr.mxu0 0.0
    %1265 = vmatpush1.msra.mxu0 0.0
    %1266 = vmatprep.mubr.f32.mxu0 0.0
    %1267 = vmatmul.mubr.f32.gmra.mrb[0].mxu0 %v1200
    %v1268 = vpop.f32.mrb[0].mxu0
    %v1269 = vadd.f32 0.0, %v1268
    %v1270 = vpop.f32.mrb[0].mxu0
    %1271 = vdwg.mxu0
    %v1272 = vxor.u32 %v1269, 2147483648
    %v1273 = vmul.f32 %v1272, 1.442695
    %v1274 = vpow.pop %v1273
    %v1275 = vadd.f32 %v1274, 1.0
    %v1276 = vrcp.pop %v1275
    %v1277 = vmul.f32 1.0, %v1276
    %v1278 = vld [vmem:[%s11] sm:$0xf]
    %vm1279 = vcmask 31744
    %v1281 = vsel %vm1279, %v1277, 0
    %vm1283 = vcmask 1043456
    %v1285 = vsel %vm1283, %v1278, 0
    %1287 = vmatprep.subr.mxu0 0.0
    %1288 = vmatpush1.msra.mxu0 %v1285
    %1289 = vmatprep.subr.mxu0 0.0
    %1290 = vmatpush1.msra.mxu0 0.0
    %1291 = vmatprep.subr.mxu0 0.0
    %1292 = vmatpush1.msra.mxu0 0.0
    %1293 = vmatprep.subr.mxu0 0.0
    %1294 = vmatpush1.msra.mxu0 0.0
    %1295 = vmatprep.subr.mxu0 0.0
    %1296 = vmatpush1.msra.mxu0 0.0
    %1297 = vmatprep.subr.mxu0 0.0
    %1298 = vmatpush1.msra.mxu0 0.0
    %1299 = vmatprep.subr.mxu0 0.0
    %1300 = vmatpush1.msra.mxu0 0.0
    %1301 = vmatprep.subr.mxu0 0.0
    %1302 = vmatpush1.msra.mxu0 0.0
    %1303 = vmatprep.subr.mxu0 0.0
    %1304 = vmatpush1.msra.mxu0 0.0
    %1305 = vmatprep.subr.mxu0 0.0
    %1306 = vmatpush1.msra.mxu0 0.0
    %1307 = vmatprep.subr.mxu0 0.0
    %1308 = vmatpush1.msra.mxu0 0.0
    %1309 = vmatprep.subr.mxu0 0.0
    %1310 = vmatpush1.msra.mxu0 0.0
    %1311 = vmatprep.subr.mxu0 0.0
    %1312 = vmatpush1.msra.mxu0 0.0
    %1313 = vmatprep.subr.mxu0 0.0
    %1314 = vmatpush1.msra.mxu0 0.0
    %1315 = vmatprep.subr.mxu0 0.0
    %1316 = vmatpush1.msra.mxu0 0.0
    %1317 = vmatprep.subr.mxu0 0.0
    %1318 = vmatpush1.msra.mxu0 0.0
    %1319 = vmatprep.subr.mxu0 0.0
    %1320 = vmatpush1.msra.mxu0 0.0
    %1321 = vmatprep.subr.mxu0 0.0
    %1322 = vmatpush1.msra.mxu0 0.0
    %1323 = vmatprep.subr.mxu0 0.0
    %1324 = vmatpush1.msra.mxu0 0.0
    %1325 = vmatprep.subr.mxu0 0.0
    %1326 = vmatpush1.msra.mxu0 0.0
    %1327 = vmatprep.subr.mxu0 0.0
    %1328 = vmatpush1.msra.mxu0 0.0
    %1329 = vmatprep.subr.mxu0 0.0
    %1330 = vmatpush1.msra.mxu0 0.0
    %1331 = vmatprep.subr.mxu0 0.0
    %1332 = vmatpush1.msra.mxu0 0.0
    %1333 = vmatprep.subr.mxu0 0.0
    %1334 = vmatpush1.msra.mxu0 0.0
    %1335 = vmatprep.subr.mxu0 0.0
    %1336 = vmatpush1.msra.mxu0 0.0
    %1337 = vmatprep.subr.mxu0 0.0
    %1338 = vmatpush1.msra.mxu0 0.0
    %1339 = vmatprep.subr.mxu0 0.0
    %1340 = vmatpush1.msra.mxu0 0.0
    %1341 = vmatprep.subr.mxu0 0.0
    %1342 = vmatpush1.msra.mxu0 0.0
    %1343 = vmatprep.subr.mxu0 0.0
    %1344 = vmatpush1.msra.mxu0 0.0
    %1345 = vmatprep.subr.mxu0 0.0
    %1346 = vmatpush1.msra.mxu0 0.0
    %1347 = vmatprep.subr.mxu0 0.0
    %1348 = vmatpush1.msra.mxu0 0.0
    %1349 = vmatprep.subr.mxu0 0.0
    %1350 = vmatpush1.msra.mxu0 0.0
    %1351 = vmatprep.mubr.f32.mxu0 0.0
    %1352 = vmatmul.mubr.f32.gmra.mrb[0].mxu0 %v1281
    %v1353 = vpop.f32.mrb[0].mxu0
    %v1354 = vadd.f32 0.0, %v1353
    %v1355 = vpop.f32.mrb[0].mxu0
    %1356 = vdwg.mxu0
    %v1357 = vld [vmem:[%s12] sm:$0xff]
    %v1358 = vld [vmem:[%s12 + $0x8] sm:$0xff]
    %v1359 = vld [vmem:[%s12 + $0x10] sm:$0xff]
    %v1360 = vld [vmem:[%s12 + $0x18] sm:$0xff]
    %vm1361 = vcmask 15360
    %v1363 = vsel %vm1361, %v1357, 0
    %v1366 = vsel %vm1361, %v1358, 0
    %v1369 = vsel %vm1361, %v1359, 0
    %v1372 = vsel %vm1361, %v1360, 0
    %vm1374 = vcmask 1041408
    %v1376 = vsel %vm1374, %v1354, 0
    %1378 = vmatprep.subr.mxu0 0.0
    %1379 = vmatpush1.msra.mxu0 %v1376
    %1380 = vmatprep.subr.mxu0 0.0
    %1381 = vmatpush1.msra.mxu0 0.0
    %1382 = vmatprep.subr.mxu0 0.0
    %1383 = vmatpush1.msra.mxu0 0.0
    %1384 = vmatprep.subr.mxu0 0.0
    %1385 = vmatpush1.msra.mxu0 0.0
    %1386 = vmatprep.subr.mxu0 0.0
    %1387 = vmatpush1.msra.mxu0 0.0
    %1388 = vmatprep.subr.mxu0 0.0
    %1389 = vmatpush1.msra.mxu0 0.0
    %1390 = vmatprep.subr.mxu0 0.0
    %1391 = vmatpush1.msra.mxu0 0.0
    %1392 = vmatprep.subr.mxu0 0.0
    %1393 = vmatpush1.msra.mxu0 0.0
    %1394 = vmatprep.subr.mxu0 0.0
    %1395 = vmatpush1.msra.mxu0 0.0
    %1396 = vmatprep.subr.mxu0 0.0
    %1397 = vmatpush1.msra.mxu0 0.0
    %1398 = vmatprep.subr.mxu0 0.0
    %1399 = vmatpush1.msra.mxu0 0.0
    %1400 = vmatprep.subr.mxu0 0.0
    %1401 = vmatpush1.msra.mxu0 0.0
    %1402 = vmatprep.subr.mxu0 0.0
    %1403 = vmatpush1.msra.mxu0 0.0
    %1404 = vmatprep.subr.mxu0 0.0
    %1405 = vmatpush1.msra.mxu0 0.0
    %1406 = vmatprep.subr.mxu0 0.0
    %1407 = vmatpush1.msra.mxu0 0.0
    %1408 = vmatprep.subr.mxu0 0.0
    %1409 = vmatpush1.msra.mxu0 0.0
    %1410 = vmatprep.subr.mxu0 0.0
    %1411 = vmatpush1.msra.mxu0 0.0
    %1412 = vmatprep.subr.mxu0 0.0
    %1413 = vmatpush1.msra.mxu0 0.0
    %1414 = vmatprep.subr.mxu0 0.0
    %1415 = vmatpush1.msra.mxu0 0.0
    %1416 = vmatprep.subr.mxu0 0.0
    %1417 = vmatpush1.msra.mxu0 0.0
    %1418 = vmatprep.subr.mxu0 0.0
    %1419 = vmatpush1.msra.mxu0 0.0
    %1420 = vmatprep.subr.mxu0 0.0
    %1421 = vmatpush1.msra.mxu0 0.0
    %1422 = vmatprep.subr.mxu0 0.0
    %1423 = vmatpush1.msra.mxu0 0.0
    %1424 = vmatprep.subr.mxu0 0.0
    %1425 = vmatpush1.msra.mxu0 0.0
    %1426 = vmatprep.subr.mxu0 0.0
    %1427 = vmatpush1.msra.mxu0 0.0
    %1428 = vmatprep.subr.mxu0 0.0
    %1429 = vmatpush1.msra.mxu0 0.0
    %1430 = vmatprep.subr.mxu0 0.0
    %1431 = vmatpush1.msra.mxu0 0.0
    %1432 = vmatprep.subr.mxu0 0.0
    %1433 = vmatpush1.msra.mxu0 0.0
    %1434 = vmatprep.subr.mxu0 0.0
    %1435 = vmatpush1.msra.mxu0 0.0
    %1436 = vmatprep.subr.mxu0 0.0
    %1437 = vmatpush1.msra.mxu0 0.0
    %1438 = vmatprep.subr.mxu0 0.0
    %1439 = vmatpush1.msra.mxu0 0.0
    %1440 = vmatprep.subr.mxu0 0.0
    %1441 = vmatpush1.msra.mxu0 0.0
    %1442 = vmatprep.mubr.f32.mxu0 0.0
    %1443 = vmatmul.mubr.f32.gmra.mrb[0].mxu0 %v1363
    %v1444 = vpop.f32.mrb[0].mxu0
    %v1445 = vadd.f32 0.0, %v1444
    %v1446 = vpop.f32.mrb[0].mxu0
    %1447 = vmatprep.mubr.f32.mxu0 0.0
    %1448 = vmatmul.mubr.f32.gmra.mrb[0].mxu0 %v1366
    %v1449 = vpop.f32.mrb[0].mxu0
    %v1450 = vadd.f32 0.0, %v1449
    %v1451 = vpop.f32.mrb[0].mxu0
    %1452 = vmatprep.mubr.f32.mxu0 0.0
    %1453 = vmatmul.mubr.f32.gmra.mrb[0].mxu0 %v1369
    %v1454 = vpop.f32.mrb[0].mxu0
    %v1455 = vadd.f32 0.0, %v1454
    %v1456 = vpop.f32.mrb[0].mxu0
    %1457 = vmatprep.mubr.f32.mxu0 0.0
    %1458 = vmatmul.mubr.f32.gmra.mrb[0].mxu0 %v1372
    %v1459 = vpop.f32.mrb[0].mxu0
    %v1460 = vadd.f32 0.0, %v1459
    %v1461 = vpop.f32.mrb[0].mxu0
    %1462 = vdwg.mxu0
    %v1463 = vmul.f32 %v1089, %v1445
    %v1464 = vmul.f32 %v1090, %v1450
    %v1465 = vmul.f32 %v1091, %v1455
    %v1466 = vmul.f32 %v1092, %v1460
    %v1467 = vadd.f32 %v1463, %v73
    %v1468 = vadd.f32 %v1464, %v74
    %v1469 = vadd.f32 %v1465, %v75
    %v1470 = vadd.f32 %v1466, %v76
    %v1471 = vmax.f32 %v1467, 0.0
    %v1472 = vmax.f32 %v1468, 0.0
    %v1473 = vmax.f32 %v1469, 0.0
    %v1474 = vmax.f32 %v1470, 0.0
    %1475 = vst.msk [vmem:[#allocation7] sm:$0xff] %vm93, %v1471
    %1476 = vst.msk [vmem:[#allocation7 + $0x8] sm:$0xff] %vm93, %v1472
    %1477 = vst.msk [vmem:[#allocation7 + $0x10] sm:$0xff] %vm93, %v1473
    %1478 = vst.msk [vmem:[#allocation7 + $0x18] sm:$0xff] %vm93, %v1474
    // Predicated region
    $region62: #{tpu_custom_call.1} parent=1 // pred_check
      _
    $region63: #{tpu_custom_call.1} parent=1 // pred_check_branch
      %1480 = sbr.rel (0) target = $region65
    $region64: #{tpu_custom_call.1} parent=1 // pred_region
      %s1482 = ssub.s32 512, 512
      %1483 = vsyncadd [#allocation4], %s1482
      %s1484 = sshll.u32 [#allocation7], 4
      %s1485 = int_to_ptr.vmem [resolvable:$true] %s1484
      %1490 = dma.vmem_to_hbm [thread:$0]  %s1485, 512, %s13, [#allocation4], 128, 128, 8
    $region65: #{tpu_custom_call.1} parent=1 // pred_fallthru
      _
    // Predicated region
    $region66: #{tpu_custom_call.1} parent=1 // pred_check
      _
    $region67: #{tpu_custom_call.1} parent=1 // pred_check_branch
      %1492 = sbr.rel (0) target = $region69
    $region68: #{tpu_custom_call.1} parent=1 // pred_region
      %1493 = dma.done [#allocation4], 512
    $region69: #{tpu_custom_call.1} parent=1 // pred_fallthru
      _
    %1494 = vsyncpa [#allocation3], 1
    %1495 = vsyncpa [#allocation6], 1
    %1496 = vsyncpa [#allocation4], 1

</llo_original>
